<compile_context>
chip_gen: v6e
topology: v6e:2x2x1
jax: 0.10.0
libtpu: 0.0.40
codegen_flags: <defaults>
</compile_context>

<pallas_src>
import functools
import math

import jax
import jax.numpy as jnp
import numpy as np
from jax.experimental import pallas as pl
from jax.experimental.pallas import tpu as pltpu


def _encoder_block_kernel(num_heads, B, S,
                          valid_ref,                 # SMEM (B,) int32
                          x_ref,                     # VMEM (B*S, D) f32
                          wqkv_ref, wo_ref,          # (D, 3D) bf16, (D, D) bf16
                          g1_ref, bt1_ref,           # (1, D) f32
                          w1_ref, b1_ref,            # (D, F) bf16, (1, F) f32
                          w2_ref, b2_ref,            # (F, D) bf16, (1, D) f32
                          g2_ref, bt2_ref,           # (1, D) f32
                          o_ref):                    # VMEM (B*S, D) f32
    x = x_ref[...]                                   # (BS, D) f32
    BS, D = x.shape
    H = num_heads
    hd = D // H
    scale = jnp.float32(1.0 / math.sqrt(hd))

    # --- key mask (B, S_q, S_k): key position < valid_len[b]; per-batch scalar from SMEM ---
    key_ids = jax.lax.broadcasted_iota(jnp.int32, (B, S, S), 2)
    batch_ids = jax.lax.broadcasted_iota(jnp.int32, (B, S, S), 0)
    vl = jnp.zeros((B, S, S), jnp.int32)
    for bb in range(B):                              # B is a small static constant
        vl = jnp.where(batch_ids == bb, valid_ref[bb], vl)
    mask = key_ids < vl

    # --- fused Q/K/V projection: one [BS, D] @ [D, 3D] matmul (bf16 in, f32 acc) ---
    x_bf = x.astype(jnp.bfloat16)
    qkv = jnp.dot(x_bf, wqkv_ref[...], preferred_element_type=jnp.float32)   # (BS, 3D)

    # --- per-head attention, batched over B with dot_general (no 4-D transposes) ---
    head_outs = []
    for h in range(H):
        lo = h * hd
        qh = (qkv[:, lo:lo + hd] * scale).reshape(B, S, hd).astype(jnp.bfloat16)
        kh = qkv[:, D + lo:D + lo + hd].reshape(B, S, hd).astype(jnp.bfloat16)
        vh = qkv[:, 2 * D + lo:2 * D + lo + hd].reshape(B, S, hd).astype(jnp.bfloat16)
        s = jnp.einsum('bqd,bkd->bqk', qh, kh,
                       preferred_element_type=jnp.float32)                   # (B,S,S) f32
        # PyTorch _seq_mask sets masked positions to 1e-6 (NOT -inf) before softmax.
        s = jnp.where(mask, s, jnp.float32(1e-6))
        m = jnp.max(s, axis=-1, keepdims=True)
        e = jnp.exp(s - m)
        denom = jnp.sum(e, axis=-1, keepdims=True)
        p = e * pl.reciprocal(denom, approx=True)                            # softmax (f32)
        oh = jnp.einsum('bqk,bkd->bqd', p.astype(jnp.bfloat16), vh,
                        preferred_element_type=jnp.float32)                  # (B,S,hd)
        head_outs.append(oh.reshape(B * S, hd))
    attn = jnp.concatenate(head_outs, axis=-1)                               # (BS, D) f32
    attn_out = jnp.dot(attn.astype(jnp.bfloat16), wo_ref[...],
                       preferred_element_type=jnp.float32)                   # (BS, D)

    def layer_norm(t, g, bt):
        mu = jnp.mean(t, axis=-1, keepdims=True)
        c = t - mu
        var = jnp.mean(c * c, axis=-1, keepdims=True)   # unbiased=False
        return g * (c * jax.lax.rsqrt(var + jnp.float32(1e-12))) + bt

    # --- AddNorm 1 (f32) ---
    y = layer_norm(attn_out + x, g1_ref[...], bt1_ref[...])

    # --- Positionwise FFN (bf16 matmul operands, f32 accumulation) ---
    h1 = jnp.dot(y.astype(jnp.bfloat16), w1_ref[...],
                 preferred_element_type=jnp.float32) + b1_ref[...]
    h1 = jnp.maximum(h1, jnp.float32(0.0))
    ffn = jnp.dot(h1.astype(jnp.bfloat16), w2_ref[...],
                  preferred_element_type=jnp.float32) + b2_ref[...]

    # --- AddNorm 2 (f32) ---
    z = layer_norm(ffn + y, g2_ref[...], bt2_ref[...])
    o_ref[...] = z.astype(o_ref.dtype)


def prepare_params(params):
    """One-time param prep: fuse QKV weights and cast matmul weights to bf16."""
    bf = jnp.bfloat16
    return {
        "w_qkv": jnp.concatenate([params["wq"], params["wk"], params["wv"]],
                                 axis=1).astype(bf),          # (D, 3D)
        "wo": params["wo"].astype(bf),
        "w1": params["w1"].astype(bf),
        "w2": params["w2"].astype(bf),
        "b1": params["b1"], "b2": params["b2"],
        "g1": params["g1"], "bt1": params["bt1"],
        "g2": params["g2"], "bt2": params["bt2"],
    }


@functools.partial(jax.jit, static_argnames=("num_heads",))
def transformer_encoder_block(x, valid_len, kparams, num_heads):
    B, S, D = x.shape
    x2 = x.reshape(B * S, D)                         # fold batch into matmul M dim

    kernel = functools.partial(_encoder_block_kernel, num_heads, B, S)
    vmem = pl.BlockSpec(memory_space=pltpu.MemorySpace.VMEM)
    smem = pl.BlockSpec(memory_space=pltpu.MemorySpace.SMEM)

    out = pl.pallas_call(
        kernel,
        out_shape=jax.ShapeDtypeStruct((B * S, D), jnp.float32),
        in_specs=[smem] + [vmem] * 11,
        out_specs=vmem,
        compiler_params=pltpu.CompilerParams(vmem_limit_bytes=32 * 1024 * 1024),
    )(valid_len.astype(jnp.int32), x2,
      kparams["w_qkv"], kparams["wo"],
      kparams["g1"], kparams["bt1"],
      kparams["w1"], kparams["b1"], kparams["w2"], kparams["b2"],
      kparams["g2"], kparams["bt2"])
    return out.reshape(B, S, D)


def reference_block(x, valid_len, p, num_heads):
    """Pure-JAX f32 reference mirroring the PyTorch forward (eval mode)."""
    B, S, D = x.shape
    hd = D // num_heads

    def split_heads(t):
        return t.reshape(B, S, num_heads, hd).transpose(0, 2, 1, 3).reshape(B * num_heads, S, hd)

    q, k, v = (split_heads(x @ p[n]) for n in ("wq", "wk", "wv"))
    scores = jnp.einsum("bqd,bkd->bqk", q, k) / jnp.sqrt(jnp.float32(hd))
    vl = jnp.repeat(valid_len, num_heads)
    key_ids = jnp.arange(S)[None, None, :]
    scores = jnp.where(key_ids < vl[:, None, None], scores, jnp.float32(1e-6))
    attn = jax.nn.softmax(scores, axis=-1)
    out = jnp.einsum("bqk,bkd->bqd", attn, v)
    out = out.reshape(B, num_heads, S, hd).transpose(0, 2, 1, 3).reshape(B, S, D)
    out = out @ p["wo"]

    def ln(t, g, bt):
        m = t.mean(-1, keepdims=True)
        var = ((t - m) ** 2).mean(-1, keepdims=True)
        return g * (t - m) / jnp.sqrt(var + 1e-12) + bt

    y = ln(out + x, p["g1"], p["bt1"])
    ffn = jnp.maximum(y @ p["w1"] + p["b1"], 0.0) @ p["w2"] + p["b2"]
    return ln(ffn + y, p["g2"], p["bt2"])


if __name__ == "__main__":
    B, S, D = 2, 8, 32          # batch, seq, num_hiddens
    NUM_HEADS = 4
    FFN_H = 64

    key = jax.random.PRNGKey(0)
    keys = jax.random.split(key, 10)
    scale = 0.05
    params = {
        "wq": scale * jax.random.normal(keys[0], (D, D), jnp.float32),
        "wk": scale * jax.random.normal(keys[1], (D, D), jnp.float32),
        "wv": scale * jax.random.normal(keys[2], (D, D), jnp.float32),
        "wo": scale * jax.random.normal(keys[3], (D, D), jnp.float32),
        "g1": jnp.ones((1, D), jnp.float32),
        "bt1": jnp.zeros((1, D), jnp.float32),
        "w1": scale * jax.random.normal(keys[4], (D, FFN_H), jnp.float32),
        "b1": 0.1 * jax.random.normal(keys[5], (1, FFN_H), jnp.float32),
        "w2": scale * jax.random.normal(keys[6], (FFN_H, D), jnp.float32),
        "b2": 0.1 * jax.random.normal(keys[7], (1, D), jnp.float32),
        "g2": jnp.ones((1, D), jnp.float32),
        "bt2": jnp.zeros((1, D), jnp.float32),
    }

    x = jax.random.normal(keys[8], (B, S, D), jnp.float32)
    valid_len = jnp.array([5, 8], dtype=jnp.int32)

    kparams = prepare_params(params)                 # one-time bf16 cast / QKV fuse
    out = transformer_encoder_block(x, valid_len, kparams, NUM_HEADS)
    out = jax.block_until_ready(out)

    ref = reference_block(x, valid_len, params, NUM_HEADS)
    # bf16 matmul operands (f32 accumulation) + approx reciprocal vs f32 reference.
    np.testing.assert_allclose(np.asarray(out), np.asarray(ref), rtol=2e-2, atol=2e-2)

    print("KERNEL_OK")
</pallas_src>

<mosaic_0001>
module attributes {stable_mosaic.version = 11 : i64} {
  func.func @_encoder_block_kernel(%arg0: memref<2xi32, #tpu.memory_space<smem>>, %arg1: memref<16x32xf32, #tpu.memory_space<vmem>>, %arg2: memref<32x96xbf16, #tpu.memory_space<vmem>>, %arg3: memref<32x32xbf16, #tpu.memory_space<vmem>>, %arg4: memref<1x32xf32, #tpu.memory_space<vmem>>, %arg5: memref<1x32xf32, #tpu.memory_space<vmem>>, %arg6: memref<32x64xbf16, #tpu.memory_space<vmem>>, %arg7: memref<1x64xf32, #tpu.memory_space<vmem>>, %arg8: memref<64x32xbf16, #tpu.memory_space<vmem>>, %arg9: memref<1x32xf32, #tpu.memory_space<vmem>>, %arg10: memref<1x32xf32, #tpu.memory_space<vmem>>, %arg11: memref<1x32xf32, #tpu.memory_space<vmem>>, %arg12: memref<16x32xf32, #tpu.memory_space<vmem>>) attributes {dimension_semantics = [], scalar_prefetch = 0 : i64, scratch_operands = 0 : i64, tpu.core_type = #tpu.core_type<tc>} {
    %c0 = arith.constant 0 : index
    %c0_0 = arith.constant 0 : index
    %0 = vector.load %arg1[%c0, %c0_0] : memref<16x32xf32, #tpu.memory_space<vmem>>, vector<16x32xf32>
    %1 = tpu.iota {dimensions = array<i32: 2>} : vector<2x8x8xi32>
    %2 = tpu.iota {dimensions = array<i32: 0>} : vector<2x8x8xi32>
    %c0_i32 = arith.constant 0 : i32
    %3 = vector.broadcast %c0_i32 : i32 to vector<2x8x8xi32>
    %c0_i32_1 = arith.constant 0 : i32
    %4 = vector.broadcast %c0_i32_1 : i32 to vector<2x8x8xi32>
    %5 = arith.cmpi eq, %2, %4 : vector<2x8x8xi32>
    %c0_2 = arith.constant 0 : index
    %6 = memref.load %arg0[%c0_2] : memref<2xi32, #tpu.memory_space<smem>>
    %7 = vector.broadcast %6 : i32 to vector<2x8x8xi32>
    %8 = arith.select %5, %7, %3 : vector<2x8x8xi1>, vector<2x8x8xi32>
    %c1_i32 = arith.constant 1 : i32
    %9 = vector.broadcast %c1_i32 : i32 to vector<2x8x8xi32>
    %10 = arith.cmpi eq, %2, %9 : vector<2x8x8xi32>
    %c1 = arith.constant 1 : index
    %11 = memref.load %arg0[%c1] : memref<2xi32, #tpu.memory_space<smem>>
    %12 = vector.broadcast %11 : i32 to vector<2x8x8xi32>
    %13 = arith.select %10, %12, %8 : vector<2x8x8xi1>, vector<2x8x8xi32>
    %14 = arith.cmpi slt, %1, %13 : vector<2x8x8xi32>
    %15 = arith.truncf %0 : vector<16x32xf32> to vector<16x32xbf16>
    %c0_3 = arith.constant 0 : index
    %c0_4 = arith.constant 0 : index
    %16 = vector.load %arg2[%c0_3, %c0_4] : memref<32x96xbf16, #tpu.memory_space<vmem>>, vector<32x96xbf16>
    %cst = arith.constant dense<0.000000e+00> : vector<16x96xf32>
    %17 = tpu.matmul %15, %16, %cst {dimension_numbers = #tpu.dot_dimension_numbers<[1], [0], [0], [1], [0, 0, 1, 1], [], []>} : vector<16x32xbf16>, vector<32x96xbf16>, vector<16x96xf32> -> vector<16x96xf32>
    %18 = vector.extract_strided_slice %17 {offsets = [0, 0], sizes = [16, 8], strides = [1, 1]} : vector<16x96xf32> to vector<16x8xf32>
    %cst_5 = arith.constant 0.353553385 : f32
    %19 = vector.broadcast %cst_5 : f32 to vector<16x8xf32>
    %20 = arith.mulf %18, %19 : vector<16x8xf32>
    %21 = vector.shape_cast %20 : vector<16x8xf32> to vector<2x8x8xf32>
    %22 = arith.truncf %21 : vector<2x8x8xf32> to vector<2x8x8xbf16>
    %23 = vector.extract_strided_slice %17 {offsets = [0, 32], sizes = [16, 8], strides = [1, 1]} : vector<16x96xf32> to vector<16x8xf32>
    %24 = vector.shape_cast %23 : vector<16x8xf32> to vector<2x8x8xf32>
    %25 = arith.truncf %24 : vector<2x8x8xf32> to vector<2x8x8xbf16>
    %26 = vector.extract_strided_slice %17 {offsets = [0, 64], sizes = [16, 8], strides = [1, 1]} : vector<16x96xf32> to vector<16x8xf32>
    %27 = vector.shape_cast %26 : vector<16x8xf32> to vector<2x8x8xf32>
    %28 = arith.truncf %27 : vector<2x8x8xf32> to vector<2x8x8xbf16>
    "tpu.trace_start"() <{level = 10 : i32, message = "bqd,bkd->bqk"}> : () -> ()
    %cst_6 = arith.constant dense<0.000000e+00> : vector<2x8x8xf32>
    %29 = tpu.matmul %22, %25, %cst_6 {dimension_numbers = #tpu.dot_dimension_numbers<[2], [2], [1], [1], [0, 0, 0, 1, 1, 1], [0], [0]>} : vector<2x8x8xbf16>, vector<2x8x8xbf16>, vector<2x8x8xf32> -> vector<2x8x8xf32>
    %cst_7 = arith.constant 9.99999997E-7 : f32
    "tpu.trace_stop"() : () -> ()
    %30 = vector.broadcast %cst_7 : f32 to vector<2x8x8xf32>
    %31 = arith.select %14, %29, %30 : vector<2x8x8xi1>, vector<2x8x8xf32>
    %cst_8 = arith.constant dense<0xFF800000> : vector<2x8xf32>
    %32 = vector.multi_reduction <maximumf>, %31, %cst_8 [2] : vector<2x8x8xf32> to vector<2x8xf32>
    %33 = vector.shape_cast %32 : vector<2x8xf32> to vector<2x8x1xf32>
    %34 = vector.broadcast %33 : vector<2x8x1xf32> to vector<2x8x8xf32>
    %35 = arith.subf %31, %34 : vector<2x8x8xf32>
    %36 = math.exp %35 : vector<2x8x8xf32>
    %cst_9 = arith.constant dense<0.000000e+00> : vector<2x8xf32>
    %37 = vector.multi_reduction <add>, %36, %cst_9 [2] : vector<2x8x8xf32> to vector<2x8xf32>
    %38 = vector.shape_cast %37 : vector<2x8xf32> to vector<2x8x1xf32>
    %39 = tpu.reciprocal %38 {approx = true} : vector<2x8x1xf32> -> vector<2x8x1xf32>
    %40 = vector.broadcast %39 : vector<2x8x1xf32> to vector<2x8x8xf32>
    %41 = arith.mulf %36, %40 : vector<2x8x8xf32>
    %42 = arith.truncf %41 : vector<2x8x8xf32> to vector<2x8x8xbf16>
    "tpu.trace_start"() <{level = 10 : i32, message = "bqk,bkd->bqd"}> : () -> ()
    %cst_10 = arith.constant dense<0.000000e+00> : vector<2x8x8xf32>
    %43 = tpu.matmul %42, %28, %cst_10 {dimension_numbers = #tpu.dot_dimension_numbers<[2], [1], [1], [2], [0, 0, 0, 1, 1, 2], [0], [0]>} : vector<2x8x8xbf16>, vector<2x8x8xbf16>, vector<2x8x8xf32> -> vector<2x8x8xf32>
    "tpu.trace_stop"() : () -> ()
    %44 = vector.shape_cast %43 : vector<2x8x8xf32> to vector<16x8xf32>
    %45 = vector.extract_strided_slice %17 {offsets = [0, 8], sizes = [16, 8], strides = [1, 1]} : vector<16x96xf32> to vector<16x8xf32>
    %cst_11 = arith.constant 0.353553385 : f32
    %46 = vector.broadcast %cst_11 : f32 to vector<16x8xf32>
    %47 = arith.mulf %45, %46 : vector<16x8xf32>
    %48 = vector.shape_cast %47 : vector<16x8xf32> to vector<2x8x8xf32>
    %49 = arith.truncf %48 : vector<2x8x8xf32> to vector<2x8x8xbf16>
    %50 = vector.extract_strided_slice %17 {offsets = [0, 40], sizes = [16, 8], strides = [1, 1]} : vector<16x96xf32> to vector<16x8xf32>
    %51 = vector.shape_cast %50 : vector<16x8xf32> to vector<2x8x8xf32>
    %52 = arith.truncf %51 : vector<2x8x8xf32> to vector<2x8x8xbf16>
    %53 = vector.extract_strided_slice %17 {offsets = [0, 72], sizes = [16, 8], strides = [1, 1]} : vector<16x96xf32> to vector<16x8xf32>
    %54 = vector.shape_cast %53 : vector<16x8xf32> to vector<2x8x8xf32>
    %55 = arith.truncf %54 : vector<2x8x8xf32> to vector<2x8x8xbf16>
    "tpu.trace_start"() <{level = 10 : i32, message = "bqd,bkd->bqk"}> : () -> ()
    %cst_12 = arith.constant dense<0.000000e+00> : vector<2x8x8xf32>
    %56 = tpu.matmul %49, %52, %cst_12 {dimension_numbers = #tpu.dot_dimension_numbers<[2], [2], [1], [1], [0, 0, 0, 1, 1, 1], [0], [0]>} : vector<2x8x8xbf16>, vector<2x8x8xbf16>, vector<2x8x8xf32> -> vector<2x8x8xf32>
    %cst_13 = arith.constant 9.99999997E-7 : f32
    "tpu.trace_stop"() : () -> ()
    %57 = vector.broadcast %cst_13 : f32 to vector<2x8x8xf32>
    %58 = arith.select %14, %56, %57 : vector<2x8x8xi1>, vector<2x8x8xf32>
    %cst_14 = arith.constant dense<0xFF800000> : vector<2x8xf32>
    %59 = vector.multi_reduction <maximumf>, %58, %cst_14 [2] : vector<2x8x8xf32> to vector<2x8xf32>
    %60 = vector.shape_cast %59 : vector<2x8xf32> to vector<2x8x1xf32>
    %61 = vector.broadcast %60 : vector<2x8x1xf32> to vector<2x8x8xf32>
    %62 = arith.subf %58, %61 : vector<2x8x8xf32>
    %63 = math.exp %62 : vector<2x8x8xf32>
    %cst_15 = arith.constant dense<0.000000e+00> : vector<2x8xf32>
    %64 = vector.multi_reduction <add>, %63, %cst_15 [2] : vector<2x8x8xf32> to vector<2x8xf32>
    %65 = vector.shape_cast %64 : vector<2x8xf32> to vector<2x8x1xf32>
    %66 = tpu.reciprocal %65 {approx = true} : vector<2x8x1xf32> -> vector<2x8x1xf32>
    %67 = vector.broadcast %66 : vector<2x8x1xf32> to vector<2x8x8xf32>
    %68 = arith.mulf %63, %67 : vector<2x8x8xf32>
    %69 = arith.truncf %68 : vector<2x8x8xf32> to vector<2x8x8xbf16>
    "tpu.trace_start"() <{level = 10 : i32, message = "bqk,bkd->bqd"}> : () -> ()
    %cst_16 = arith.constant dense<0.000000e+00> : vector<2x8x8xf32>
    %70 = tpu.matmul %69, %55, %cst_16 {dimension_numbers = #tpu.dot_dimension_numbers<[2], [1], [1], [2], [0, 0, 0, 1, 1, 2], [0], [0]>} : vector<2x8x8xbf16>, vector<2x8x8xbf16>, vector<2x8x8xf32> -> vector<2x8x8xf32>
    "tpu.trace_stop"() : () -> ()
    %71 = vector.shape_cast %70 : vector<2x8x8xf32> to vector<16x8xf32>
    %72 = vector.extract_strided_slice %17 {offsets = [0, 16], sizes = [16, 8], strides = [1, 1]} : vector<16x96xf32> to vector<16x8xf32>
    %cst_17 = arith.constant 0.353553385 : f32
    %73 = vector.broadcast %cst_17 : f32 to vector<16x8xf32>
    %74 = arith.mulf %72, %73 : vector<16x8xf32>
    %75 = vector.shape_cast %74 : vector<16x8xf32> to vector<2x8x8xf32>
    %76 = arith.truncf %75 : vector<2x8x8xf32> to vector<2x8x8xbf16>
    %77 = vector.extract_strided_slice %17 {offsets = [0, 48], sizes = [16, 8], strides = [1, 1]} : vector<16x96xf32> to vector<16x8xf32>
    %78 = vector.shape_cast %77 : vector<16x8xf32> to vector<2x8x8xf32>
    %79 = arith.truncf %78 : vector<2x8x8xf32> to vector<2x8x8xbf16>
    %80 = vector.extract_strided_slice %17 {offsets = [0, 80], sizes = [16, 8], strides = [1, 1]} : vector<16x96xf32> to vector<16x8xf32>
    %81 = vector.shape_cast %80 : vector<16x8xf32> to vector<2x8x8xf32>
    %82 = arith.truncf %81 : vector<2x8x8xf32> to vector<2x8x8xbf16>
    "tpu.trace_start"() <{level = 10 : i32, message = "bqd,bkd->bqk"}> : () -> ()
    %cst_18 = arith.constant dense<0.000000e+00> : vector<2x8x8xf32>
    %83 = tpu.matmul %76, %79, %cst_18 {dimension_numbers = #tpu.dot_dimension_numbers<[2], [2], [1], [1], [0, 0, 0, 1, 1, 1], [0], [0]>} : vector<2x8x8xbf16>, vector<2x8x8xbf16>, vector<2x8x8xf32> -> vector<2x8x8xf32>
    %cst_19 = arith.constant 9.99999997E-7 : f32
    "tpu.trace_stop"() : () -> ()
    %84 = vector.broadcast %cst_19 : f32 to vector<2x8x8xf32>
    %85 = arith.select %14, %83, %84 : vector<2x8x8xi1>, vector<2x8x8xf32>
    %cst_20 = arith.constant dense<0xFF800000> : vector<2x8xf32>
    %86 = vector.multi_reduction <maximumf>, %85, %cst_20 [2] : vector<2x8x8xf32> to vector<2x8xf32>
    %87 = vector.shape_cast %86 : vector<2x8xf32> to vector<2x8x1xf32>
    %88 = vector.broadcast %87 : vector<2x8x1xf32> to vector<2x8x8xf32>
    %89 = arith.subf %85, %88 : vector<2x8x8xf32>
    %90 = math.exp %89 : vector<2x8x8xf32>
    %cst_21 = arith.constant dense<0.000000e+00> : vector<2x8xf32>
    %91 = vector.multi_reduction <add>, %90, %cst_21 [2] : vector<2x8x8xf32> to vector<2x8xf32>
    %92 = vector.shape_cast %91 : vector<2x8xf32> to vector<2x8x1xf32>
    %93 = tpu.reciprocal %92 {approx = true} : vector<2x8x1xf32> -> vector<2x8x1xf32>
    %94 = vector.broadcast %93 : vector<2x8x1xf32> to vector<2x8x8xf32>
    %95 = arith.mulf %90, %94 : vector<2x8x8xf32>
    %96 = arith.truncf %95 : vector<2x8x8xf32> to vector<2x8x8xbf16>
    "tpu.trace_start"() <{level = 10 : i32, message = "bqk,bkd->bqd"}> : () -> ()
    %cst_22 = arith.constant dense<0.000000e+00> : vector<2x8x8xf32>
    %97 = tpu.matmul %96, %82, %cst_22 {dimension_numbers = #tpu.dot_dimension_numbers<[2], [1], [1], [2], [0, 0, 0, 1, 1, 2], [0], [0]>} : vector<2x8x8xbf16>, vector<2x8x8xbf16>, vector<2x8x8xf32> -> vector<2x8x8xf32>
    "tpu.trace_stop"() : () -> ()
    %98 = vector.shape_cast %97 : vector<2x8x8xf32> to vector<16x8xf32>
    %99 = vector.extract_strided_slice %17 {offsets = [0, 24], sizes = [16, 8], strides = [1, 1]} : vector<16x96xf32> to vector<16x8xf32>
    %cst_23 = arith.constant 0.353553385 : f32
    %100 = vector.broadcast %cst_23 : f32 to vector<16x8xf32>
    %101 = arith.mulf %99, %100 : vector<16x8xf32>
    %102 = vector.shape_cast %101 : vector<16x8xf32> to vector<2x8x8xf32>
    %103 = arith.truncf %102 : vector<2x8x8xf32> to vector<2x8x8xbf16>
    %104 = vector.extract_strided_slice %17 {offsets = [0, 56], sizes = [16, 8], strides = [1, 1]} : vector<16x96xf32> to vector<16x8xf32>
    %105 = vector.shape_cast %104 : vector<16x8xf32> to vector<2x8x8xf32>
    %106 = arith.truncf %105 : vector<2x8x8xf32> to vector<2x8x8xbf16>
    %107 = vector.extract_strided_slice %17 {offsets = [0, 88], sizes = [16, 8], strides = [1, 1]} : vector<16x96xf32> to vector<16x8xf32>
    %108 = vector.shape_cast %107 : vector<16x8xf32> to vector<2x8x8xf32>
    %109 = arith.truncf %108 : vector<2x8x8xf32> to vector<2x8x8xbf16>
    "tpu.trace_start"() <{level = 10 : i32, message = "bqd,bkd->bqk"}> : () -> ()
    %cst_24 = arith.constant dense<0.000000e+00> : vector<2x8x8xf32>
    %110 = tpu.matmul %103, %106, %cst_24 {dimension_numbers = #tpu.dot_dimension_numbers<[2], [2], [1], [1], [0, 0, 0, 1, 1, 1], [0], [0]>} : vector<2x8x8xbf16>, vector<2x8x8xbf16>, vector<2x8x8xf32> -> vector<2x8x8xf32>
    %cst_25 = arith.constant 9.99999997E-7 : f32
    "tpu.trace_stop"() : () -> ()
    %111 = vector.broadcast %cst_25 : f32 to vector<2x8x8xf32>
    %112 = arith.select %14, %110, %111 : vector<2x8x8xi1>, vector<2x8x8xf32>
    %cst_26 = arith.constant dense<0xFF800000> : vector<2x8xf32>
    %113 = vector.multi_reduction <maximumf>, %112, %cst_26 [2] : vector<2x8x8xf32> to vector<2x8xf32>
    %114 = vector.shape_cast %113 : vector<2x8xf32> to vector<2x8x1xf32>
    %115 = vector.broadcast %114 : vector<2x8x1xf32> to vector<2x8x8xf32>
    %116 = arith.subf %112, %115 : vector<2x8x8xf32>
    %117 = math.exp %116 : vector<2x8x8xf32>
    %cst_27 = arith.constant dense<0.000000e+00> : vector<2x8xf32>
    %118 = vector.multi_reduction <add>, %117, %cst_27 [2] : vector<2x8x8xf32> to vector<2x8xf32>
    %119 = vector.shape_cast %118 : vector<2x8xf32> to vector<2x8x1xf32>
    %120 = tpu.reciprocal %119 {approx = true} : vector<2x8x1xf32> -> vector<2x8x1xf32>
    %121 = vector.broadcast %120 : vector<2x8x1xf32> to vector<2x8x8xf32>
    %122 = arith.mulf %117, %121 : vector<2x8x8xf32>
    %123 = arith.truncf %122 : vector<2x8x8xf32> to vector<2x8x8xbf16>
    "tpu.trace_start"() <{level = 10 : i32, message = "bqk,bkd->bqd"}> : () -> ()
    %cst_28 = arith.constant dense<0.000000e+00> : vector<2x8x8xf32>
    %124 = tpu.matmul %123, %109, %cst_28 {dimension_numbers = #tpu.dot_dimension_numbers<[2], [1], [1], [2], [0, 0, 0, 1, 1, 2], [0], [0]>} : vector<2x8x8xbf16>, vector<2x8x8xbf16>, vector<2x8x8xf32> -> vector<2x8x8xf32>
    "tpu.trace_stop"() : () -> ()
    %125 = vector.shape_cast %124 : vector<2x8x8xf32> to vector<16x8xf32>
    %126 = tpu.concatenate %44, %71, %98, %125 in 1 : vector<16x8xf32>, vector<16x8xf32>, vector<16x8xf32>, vector<16x8xf32> -> vector<16x32xf32>
    %127 = arith.truncf %126 : vector<16x32xf32> to vector<16x32xbf16>
    %c0_29 = arith.constant 0 : index
    %c0_30 = arith.constant 0 : index
    %128 = vector.load %arg3[%c0_29, %c0_30] : memref<32x32xbf16, #tpu.memory_space<vmem>>, vector<32x32xbf16>
    %cst_31 = arith.constant dense<0.000000e+00> : vector<16x32xf32>
    %129 = tpu.matmul %127, %128, %cst_31 {dimension_numbers = #tpu.dot_dimension_numbers<[1], [0], [0], [1], [0, 0, 1, 1], [], []>} : vector<16x32xbf16>, vector<32x32xbf16>, vector<16x32xf32> -> vector<16x32xf32>
    %130 = arith.addf %129, %0 : vector<16x32xf32>
    %c0_32 = arith.constant 0 : index
    %c0_33 = arith.constant 0 : index
    %131 = vector.load %arg4[%c0_32, %c0_33] : memref<1x32xf32, #tpu.memory_space<vmem>>, vector<1x32xf32>
    %c0_34 = arith.constant 0 : index
    %c0_35 = arith.constant 0 : index
    %132 = vector.load %arg5[%c0_34, %c0_35] : memref<1x32xf32, #tpu.memory_space<vmem>>, vector<1x32xf32>
    %cst_36 = arith.constant dense<0.000000e+00> : vector<16xf32>
    %133 = vector.multi_reduction <add>, %130, %cst_36 [1] : vector<16x32xf32> to vector<16xf32>
    %134 = vector.shape_cast %133 : vector<16xf32> to vector<16x1xf32>
    %cst_37 = arith.constant 3.200000e+01 : f32
    %135 = vector.broadcast %cst_37 : f32 to vector<16x1xf32>
    %136 = arith.divf %134, %135 : vector<16x1xf32>
    %137 = vector.broadcast %136 : vector<16x1xf32> to vector<16x32xf32>
    %138 = arith.subf %130, %137 : vector<16x32xf32>
    %139 = arith.mulf %138, %138 : vector<16x32xf32>
    %cst_38 = arith.constant dense<0.000000e+00> : vector<16xf32>
    %140 = vector.multi_reduction <add>, %139, %cst_38 [1] : vector<16x32xf32> to vector<16xf32>
    %141 = vector.shape_cast %140 : vector<16xf32> to vector<16x1xf32>
    %cst_39 = arith.constant 3.200000e+01 : f32
    %142 = vector.broadcast %cst_39 : f32 to vector<16x1xf32>
    %143 = arith.divf %141, %142 : vector<16x1xf32>
    %cst_40 = arith.constant 9.99999996E-13 : f32
    %144 = vector.broadcast %cst_40 : f32 to vector<16x1xf32>
    %145 = arith.addf %143, %144 : vector<16x1xf32>
    %146 = math.rsqrt %145 : vector<16x1xf32>
    %147 = vector.broadcast %146 : vector<16x1xf32> to vector<16x32xf32>
    %148 = arith.mulf %138, %147 : vector<16x32xf32>
    %149 = vector.broadcast %131 : vector<1x32xf32> to vector<16x32xf32>
    %150 = arith.mulf %149, %148 : vector<16x32xf32>
    %151 = vector.broadcast %132 : vector<1x32xf32> to vector<16x32xf32>
    %152 = arith.addf %150, %151 : vector<16x32xf32>
    %153 = arith.truncf %152 : vector<16x32xf32> to vector<16x32xbf16>
    %c0_41 = arith.constant 0 : index
    %c0_42 = arith.constant 0 : index
    %154 = vector.load %arg6[%c0_41, %c0_42] : memref<32x64xbf16, #tpu.memory_space<vmem>>, vector<32x64xbf16>
    %cst_43 = arith.constant dense<0.000000e+00> : vector<16x64xf32>
    %155 = tpu.matmul %153, %154, %cst_43 {dimension_numbers = #tpu.dot_dimension_numbers<[1], [0], [0], [1], [0, 0, 1, 1], [], []>} : vector<16x32xbf16>, vector<32x64xbf16>, vector<16x64xf32> -> vector<16x64xf32>
    %c0_44 = arith.constant 0 : index
    %c0_45 = arith.constant 0 : index
    %156 = vector.load %arg7[%c0_44, %c0_45] : memref<1x64xf32, #tpu.memory_space<vmem>>, vector<1x64xf32>
    %157 = vector.broadcast %156 : vector<1x64xf32> to vector<16x64xf32>
    %158 = arith.addf %155, %157 : vector<16x64xf32>
    %cst_46 = arith.constant 0.000000e+00 : f32
    %159 = vector.broadcast %cst_46 : f32 to vector<16x64xf32>
    %160 = arith.maximumf %158, %159 : vector<16x64xf32>
    %161 = arith.truncf %160 : vector<16x64xf32> to vector<16x64xbf16>
    %c0_47 = arith.constant 0 : index
    %c0_48 = arith.constant 0 : index
    %162 = vector.load %arg8[%c0_47, %c0_48] : memref<64x32xbf16, #tpu.memory_space<vmem>>, vector<64x32xbf16>
    %cst_49 = arith.constant dense<0.000000e+00> : vector<16x32xf32>
    %163 = tpu.matmul %161, %162, %cst_49 {dimension_numbers = #tpu.dot_dimension_numbers<[1], [0], [0], [1], [0, 0, 1, 1], [], []>} : vector<16x64xbf16>, vector<64x32xbf16>, vector<16x32xf32> -> vector<16x32xf32>
    %c0_50 = arith.constant 0 : index
    %c0_51 = arith.constant 0 : index
    %164 = vector.load %arg9[%c0_50, %c0_51] : memref<1x32xf32, #tpu.memory_space<vmem>>, vector<1x32xf32>
    %165 = vector.broadcast %164 : vector<1x32xf32> to vector<16x32xf32>
    %166 = arith.addf %163, %165 : vector<16x32xf32>
    %167 = arith.addf %166, %152 : vector<16x32xf32>
    %c0_52 = arith.constant 0 : index
    %c0_53 = arith.constant 0 : index
    %168 = vector.load %arg10[%c0_52, %c0_53] : memref<1x32xf32, #tpu.memory_space<vmem>>, vector<1x32xf32>
    %c0_54 = arith.constant 0 : index
    %c0_55 = arith.constant 0 : index
    %169 = vector.load %arg11[%c0_54, %c0_55] : memref<1x32xf32, #tpu.memory_space<vmem>>, vector<1x32xf32>
    %cst_56 = arith.constant dense<0.000000e+00> : vector<16xf32>
    %170 = vector.multi_reduction <add>, %167, %cst_56 [1] : vector<16x32xf32> to vector<16xf32>
    %171 = vector.shape_cast %170 : vector<16xf32> to vector<16x1xf32>
    %cst_57 = arith.constant 3.200000e+01 : f32
    %172 = vector.broadcast %cst_57 : f32 to vector<16x1xf32>
    %173 = arith.divf %171, %172 : vector<16x1xf32>
    %174 = vector.broadcast %173 : vector<16x1xf32> to vector<16x32xf32>
    %175 = arith.subf %167, %174 : vector<16x32xf32>
    %176 = arith.mulf %175, %175 : vector<16x32xf32>
    %cst_58 = arith.constant dense<0.000000e+00> : vector<16xf32>
    %177 = vector.multi_reduction <add>, %176, %cst_58 [1] : vector<16x32xf32> to vector<16xf32>
    %178 = vector.shape_cast %177 : vector<16xf32> to vector<16x1xf32>
    %cst_59 = arith.constant 3.200000e+01 : f32
    %179 = vector.broadcast %cst_59 : f32 to vector<16x1xf32>
    %180 = arith.divf %178, %179 : vector<16x1xf32>
    %cst_60 = arith.constant 9.99999996E-13 : f32
    %181 = vector.broadcast %cst_60 : f32 to vector<16x1xf32>
    %182 = arith.addf %180, %181 : vector<16x1xf32>
    %183 = math.rsqrt %182 : vector<16x1xf32>
    %184 = vector.broadcast %183 : vector<16x1xf32> to vector<16x32xf32>
    %185 = arith.mulf %175, %184 : vector<16x32xf32>
    %186 = vector.broadcast %168 : vector<1x32xf32> to vector<16x32xf32>
    %187 = arith.mulf %186, %185 : vector<16x32xf32>
    %188 = vector.broadcast %169 : vector<1x32xf32> to vector<16x32xf32>
    %189 = arith.addf %187, %188 : vector<16x32xf32>
    %c0_61 = arith.constant 0 : index
    %c0_62 = arith.constant 0 : index
    %190 = vector.load %arg12[%c0_61, %c0_62] : memref<16x32xf32, #tpu.memory_space<vmem>>, vector<16x32xf32>
    tpu.vector_store %arg12[%c0_61, %c0_62], %189 {strides = array<i32>} : memref<16x32xf32, #tpu.memory_space<vmem>>, vector<16x32xf32>,
    return
  }
}

</mosaic_0001>

<llo_original>
// kernel: transformer_encoder_block.1
$region0: #{transformer_encoder_block.1}
  #allocation0 [shape = 'u32[]', space=smem, size = 0x4, offset = 0x4, fixed_abs, tag = 'smem constant byte address 0x4 - core index']
  #allocation1 [shape = 'u32[144,128]{1,0:T(1,128)}', space=vmem, size = 0x12000, scoped, tag = 'internal scratch']
  %s0 = inlined_call_operand.hbm [shape: s32[2], index: 0, kind: input, shape index: {}]
  %s1 = inlined_call_operand.vmem [shape: f32[16,32], index: 1, kind: input, shape index: {}]
  %s2 = inlined_call_operand.vmem [shape: bf16[32,96], index: 2, kind: input, shape index: {}]
  %s3 = inlined_call_operand.vmem [shape: bf16[32,32], index: 3, kind: input, shape index: {}]
  %s4 = inlined_call_operand.hbm [shape: f32[1,32], index: 4, kind: input, shape index: {}]
  %s5 = inlined_call_operand.hbm [shape: f32[1,32], index: 5, kind: input, shape index: {}]
  %s6 = inlined_call_operand.vmem [shape: bf16[32,64], index: 6, kind: input, shape index: {}]
  %s7 = inlined_call_operand.hbm [shape: f32[1,64], index: 7, kind: input, shape index: {}]
  %s8 = inlined_call_operand.vmem [shape: bf16[64,32], index: 8, kind: input, shape index: {}]
  %s9 = inlined_call_operand.hbm [shape: f32[1,32], index: 9, kind: input, shape index: {}]
  %s10 = inlined_call_operand.hbm [shape: f32[1,32], index: 10, kind: input, shape index: {}]
  %s11 = inlined_call_operand.hbm [shape: f32[1,32], index: 11, kind: input, shape index: {}]
  %s12 = inlined_call_operand.hbm [shape: f32[16,32], index: 12, kind: output, shape index: {}]
  %s13 = sld [smem:[#allocation0]]
  $region86: #{transformer_encoder_block.1} parent=0
    _
  %s15 = ssub.s32 1, %s13
  %s16 = scalar_select 0, %s15, %s13
  $region1: #{transformer_encoder_block.1} parent=0
    #allocation2 [shape = 'u8[512]{0}', space=smem, size = 0x200, scoped, tag = 'input window, operand 0, single buffered']
    #allocation3 [shape = 's32[1]{0}', space=sflag, size = 0x4, scoped, tag = 'scoped memory for transformer_encoder_block.1']
    #allocation4 [shape = 's32[1]{0}', space=sflag, size = 0x4, scoped, tag = 'scoped memory for transformer_encoder_block.1']
    #allocation5 [shape = 's32[1]{0}', space=sflag, size = 0x4, scoped, tag = 'scoped memory for transformer_encoder_block.1']
    #allocation6 [shape = 'u8[512]{0}', space=vmem, size = 0x400, scoped, tag = 'input window, operand 4, single buffered']
    #allocation7 [shape = 'u8[512]{0}', space=vmem, size = 0x400, scoped, tag = 'input window, operand 5, single buffered']
    #allocation8 [shape = 's32[1]{0}', space=sflag, size = 0x4, scoped, tag = 'scoped memory for transformer_encoder_block.1']
    #allocation9 [shape = 'u8[512]{0}', space=vmem, size = 0x400, scoped, tag = 'input window, operand 7, single buffered']
    #allocation10 [shape = 'u8[512]{0}', space=vmem, size = 0x400, scoped, tag = 'input window, operand 9, single buffered']
    #allocation11 [shape = 's32[1]{0}', space=sflag, size = 0x4, scoped, tag = 'scoped memory for transformer_encoder_block.1']
    #allocation12 [shape = 'u8[512]{0}', space=vmem, size = 0x400, scoped, tag = 'input window, operand 10, single buffered']
    #allocation13 [shape = 'u8[512]{0}', space=vmem, size = 0x400, scoped, tag = 'input window, operand 11, single buffered']
    #allocation14 [shape = 's32[1]{0}', space=sflag, size = 0x4, scoped, tag = 'scoped memory for transformer_encoder_block.1']
    #allocation15 [shape = 'u8[8192]{0}', space=vmem, size = 0x2000, scoped, tag = 'output window, operand 0, single buffered']
    %17 = vsyncpa [#allocation5], 0
    %18 = vsyncpa [#allocation3], 0
    %19 = vsyncpa [#allocation8], 0
    %20 = vsyncpa [#allocation11], 0
    %21 = vsyncpa [#allocation14], 0
    %22 = vsyncpa [#allocation4], 0
    // Predicated region
    $region2: #{transformer_encoder_block.1} parent=1 // pred_check
      _
    $region3: #{transformer_encoder_block.1} parent=1 // pred_check_branch
      %24 = sbr.rel (0) target = $region5
    $region4: #{transformer_encoder_block.1} parent=1 // pred_region
      %s26 = ssub.s32 16, 16
      %27 = vsyncadd [#allocation5], %s26
      %30 = dma.hbm_to_smem %s0, 16, [#allocation2], [#allocation5]
    $region5: #{transformer_encoder_block.1} parent=1 // pred_fallthru
      _
    // Predicated region
    $region6: #{transformer_encoder_block.1} parent=1 // pred_check
      _
    $region7: #{transformer_encoder_block.1} parent=1 // pred_check_branch
      %32 = sbr.rel (0) target = $region9
    $region8: #{transformer_encoder_block.1} parent=1 // pred_region
      _
    $region9: #{transformer_encoder_block.1} parent=1 // pred_fallthru
      _
    // Predicated region
    $region10: #{transformer_encoder_block.1} parent=1 // pred_check
      _
    $region11: #{transformer_encoder_block.1} parent=1 // pred_check_branch
      %34 = sbr.rel (0) target = $region13
    $region12: #{transformer_encoder_block.1} parent=1 // pred_region
      _
    $region13: #{transformer_encoder_block.1} parent=1 // pred_fallthru
      _
    // Predicated region
    $region14: #{transformer_encoder_block.1} parent=1 // pred_check
      _
    $region15: #{transformer_encoder_block.1} parent=1 // pred_check_branch
      %36 = sbr.rel (0) target = $region17
    $region16: #{transformer_encoder_block.1} parent=1 // pred_region
      _
    $region17: #{transformer_encoder_block.1} parent=1 // pred_fallthru
      _
    // Predicated region
    $region18: #{transformer_encoder_block.1} parent=1 // pred_check
      _
    $region19: #{transformer_encoder_block.1} parent=1 // pred_check_branch
      %38 = sbr.rel (0) target = $region21
    $region20: #{transformer_encoder_block.1} parent=1 // pred_region
      %s40 = ssub.s32 16, 16
      %41 = vsyncadd [#allocation3], %s40
      %s43 = sshll.u32 [#allocation6], 4
      %s44 = int_to_ptr.vmem [resolvable:$true] %s43
      %46 = dma.hbm_to_vmem [thread:$0]  %s4, 16, %s44, [#allocation3]
    $region21: #{transformer_encoder_block.1} parent=1 // pred_fallthru
      _
    // Predicated region
    $region22: #{transformer_encoder_block.1} parent=1 // pred_check
      _
    $region23: #{transformer_encoder_block.1} parent=1 // pred_check_branch
      %48 = sbr.rel (0) target = $region25
    $region24: #{transformer_encoder_block.1} parent=1 // pred_region
      %s50 = ssub.s32 16, 16
      %51 = vsyncadd [#allocation8], %s50
      %s53 = sshll.u32 [#allocation7], 4
      %s54 = int_to_ptr.vmem [resolvable:$true] %s53
      %56 = dma.hbm_to_vmem [thread:$0]  %s5, 16, %s54, [#allocation8]
    $region25: #{transformer_encoder_block.1} parent=1 // pred_fallthru
      _
    // Predicated region
    $region26: #{transformer_encoder_block.1} parent=1 // pred_check
      _
    $region27: #{transformer_encoder_block.1} parent=1 // pred_check_branch
      %58 = sbr.rel (0) target = $region29
    $region28: #{transformer_encoder_block.1} parent=1 // pred_region
      _
    $region29: #{transformer_encoder_block.1} parent=1 // pred_fallthru
      _
    // Predicated region
    $region30: #{transformer_encoder_block.1} parent=1 // pred_check
      _
    $region31: #{transformer_encoder_block.1} parent=1 // pred_check_branch
      %60 = sbr.rel (0) target = $region33
    $region32: #{transformer_encoder_block.1} parent=1 // pred_region
      %s62 = ssub.s32 16, 16
      %63 = vsyncadd [#allocation8], %s62
      %s65 = sshll.u32 [#allocation9], 4
      %s66 = int_to_ptr.vmem [resolvable:$true] %s65
      %68 = dma.hbm_to_vmem [thread:$0]  %s7, 16, %s66, [#allocation8]
    $region33: #{transformer_encoder_block.1} parent=1 // pred_fallthru
      _
    // Predicated region
    $region34: #{transformer_encoder_block.1} parent=1 // pred_check
      _
    $region35: #{transformer_encoder_block.1} parent=1 // pred_check_branch
      %70 = sbr.rel (0) target = $region37
    $region36: #{transformer_encoder_block.1} parent=1 // pred_region
      _
    $region37: #{transformer_encoder_block.1} parent=1 // pred_fallthru
      _
    // Predicated region
    $region38: #{transformer_encoder_block.1} parent=1 // pred_check
      _
    $region39: #{transformer_encoder_block.1} parent=1 // pred_check_branch
      %72 = sbr.rel (0) target = $region41
    $region40: #{transformer_encoder_block.1} parent=1 // pred_region
      %s74 = ssub.s32 16, 16
      %75 = vsyncadd [#allocation11], %s74
      %s77 = sshll.u32 [#allocation10], 4
      %s78 = int_to_ptr.vmem [resolvable:$true] %s77
      %80 = dma.hbm_to_vmem [thread:$0]  %s9, 16, %s78, [#allocation11]
    $region41: #{transformer_encoder_block.1} parent=1 // pred_fallthru
      _
    // Predicated region
    $region42: #{transformer_encoder_block.1} parent=1 // pred_check
      _
    $region43: #{transformer_encoder_block.1} parent=1 // pred_check_branch
      %82 = sbr.rel (0) target = $region45
    $region44: #{transformer_encoder_block.1} parent=1 // pred_region
      %s84 = ssub.s32 16, 16
      %85 = vsyncadd [#allocation11], %s84
      %s87 = sshll.u32 [#allocation12], 4
      %s88 = int_to_ptr.vmem [resolvable:$true] %s87
      %90 = dma.hbm_to_vmem [thread:$0]  %s10, 16, %s88, [#allocation11]
    $region45: #{transformer_encoder_block.1} parent=1 // pred_fallthru
      _
    // Predicated region
    $region46: #{transformer_encoder_block.1} parent=1 // pred_check
      _
    $region47: #{transformer_encoder_block.1} parent=1 // pred_check_branch
      %92 = sbr.rel (0) target = $region49
    $region48: #{transformer_encoder_block.1} parent=1 // pred_region
      %s94 = ssub.s32 16, 16
      %95 = vsyncadd [#allocation14], %s94
      %s97 = sshll.u32 [#allocation13], 4
      %s98 = int_to_ptr.vmem [resolvable:$true] %s97
      %100 = dma.hbm_to_vmem [thread:$0]  %s11, 16, %s98, [#allocation14]
    $region49: #{transformer_encoder_block.1} parent=1 // pred_fallthru
      _
    // Predicated region
    $region50: #{transformer_encoder_block.1} parent=1 // pred_check
      _
    $region51: #{transformer_encoder_block.1} parent=1 // pred_check_branch
      %102 = sbr.rel (0) target = $region53
    $region52: #{transformer_encoder_block.1} parent=1 // pred_region
      %103 = dma.done [#allocation5], 16
    $region53: #{transformer_encoder_block.1} parent=1 // pred_fallthru
      _
    // Predicated region
    $region54: #{transformer_encoder_block.1} parent=1 // pred_check
      _
    $region55: #{transformer_encoder_block.1} parent=1 // pred_check_branch
      %105 = sbr.rel (0) target = $region57
    $region56: #{transformer_encoder_block.1} parent=1 // pred_region
      %106 = dma.done [#allocation3], 16
    $region57: #{transformer_encoder_block.1} parent=1 // pred_fallthru
      _
    // Predicated region
    $region58: #{transformer_encoder_block.1} parent=1 // pred_check
      _
    $region59: #{transformer_encoder_block.1} parent=1 // pred_check_branch
      %108 = sbr.rel (0) target = $region61
    $region60: #{transformer_encoder_block.1} parent=1 // pred_region
      %109 = dma.done [#allocation8], 16
    $region61: #{transformer_encoder_block.1} parent=1 // pred_fallthru
      _
    // Predicated region
    $region62: #{transformer_encoder_block.1} parent=1 // pred_check
      _
    $region63: #{transformer_encoder_block.1} parent=1 // pred_check_branch
      %111 = sbr.rel (0) target = $region65
    $region64: #{transformer_encoder_block.1} parent=1 // pred_region
      %112 = dma.done [#allocation8], 16
    $region65: #{transformer_encoder_block.1} parent=1 // pred_fallthru
      _
    // Predicated region
    $region66: #{transformer_encoder_block.1} parent=1 // pred_check
      _
    $region67: #{transformer_encoder_block.1} parent=1 // pred_check_branch
      %114 = sbr.rel (0) target = $region69
    $region68: #{transformer_encoder_block.1} parent=1 // pred_region
      %115 = dma.done [#allocation11], 16
    $region69: #{transformer_encoder_block.1} parent=1 // pred_fallthru
      _
    // Predicated region
    $region70: #{transformer_encoder_block.1} parent=1 // pred_check
      _
    $region71: #{transformer_encoder_block.1} parent=1 // pred_check_branch
      %117 = sbr.rel (0) target = $region73
    $region72: #{transformer_encoder_block.1} parent=1 // pred_region
      %118 = dma.done [#allocation11], 16
    $region73: #{transformer_encoder_block.1} parent=1 // pred_fallthru
      _
    // Predicated region
    $region74: #{transformer_encoder_block.1} parent=1 // pred_check
      _
    $region75: #{transformer_encoder_block.1} parent=1 // pred_check_branch
      %120 = sbr.rel (0) target = $region77
    $region76: #{transformer_encoder_block.1} parent=1 // pred_region
      %121 = dma.done [#allocation14], 16
    $region77: #{transformer_encoder_block.1} parent=1 // pred_fallthru
      _
    %122 = sfence
    %v124 = vld [vmem:[%s1] sm:$0xff]
    %v125 = vld [vmem:[%s1 + $0x8] sm:$0xff]
    %v126 = vlaneseq
    %v127 = vand.u32 %v126, 127
    %s128 = sld [smem:[#allocation2]]
    %v129 = vstv %s128
    %s130 = sld [smem:[#allocation2 + $0x1]]
    %v131 = vstv %s130
    %vm132 = vcmp.lt.s32.totalorder %v127, %v129
    %vm133 = vcmp.lt.s32.totalorder %v127, %v131
    %v134 = vpack.c.bf16 %v125, %v124
    %v135 = vld [vmem:[%s2] sm:$0xf]
    %v136 = vld [vmem:[%s2 + $0x4] sm:$0xf]
    %v137 = vld [vmem:[%s2 + $0x8] sm:$0xf]
    %v138 = vld [vmem:[%s2 + $0xc] sm:$0xf]
    %v143 = vunpack.c.l.b16 %v135
    %v144 = vunpack.c.l.b16 %v136
    %v145 = vunpack.c.l.b16 %v137
    %v146 = vunpack.c.l.b16 %v138
    %v147 = vpack.c.b16 %v144, %v143
    %v148 = vpack.c.b16 %v146, %v145
    %vm151 = vcmask 261120
    %v153 = vsel %vm151, %v134, 0
    %155 = vmatprep.subr.bf16.mxu0 0
    %156 = vmatpush1.bf16.msra.mxu0 0
    %157 = vmatprep.subr.bf16.mxu0 0
    %158 = vmatpush1.bf16.msra.mxu0 0
    %159 = vmatprep.subr.bf16.mxu0 0
    %160 = vmatpush1.bf16.msra.mxu0 0
    %161 = vmatprep.subr.bf16.mxu0 0
    %162 = vmatpush1.bf16.msra.mxu0 0
    %163 = vmatprep.subr.bf16.mxu0 0
    %164 = vmatpush1.bf16.msra.mxu0 0
    %165 = vmatprep.subr.bf16.mxu0 0
    %166 = vmatpush1.bf16.msra.mxu0 0
    %167 = vmatprep.subr.bf16.mxu0 0
    %168 = vmatpush1.bf16.msra.mxu0 %v148
    %169 = vmatprep.subr.bf16.mxu0 0
    %170 = vmatpush1.bf16.msra.mxu0 %v147
    %171 = vmatprep.subr.bf16.mxu0 0
    %172 = vmatpush2.bf16.msra.mxu0 0
    %173 = vmatprep.subr.bf16.mxu0 0
    %174 = vmatpush2.bf16.msra.mxu0 0
    %175 = vmatprep.subr.bf16.mxu0 0
    %176 = vmatpush2.bf16.msra.mxu0 0
    %177 = vmatprep.subr.bf16.mxu0 0
    %178 = vmatpush2.bf16.msra.mxu0 0
    %179 = vmatprep.subr.bf16.mxu0 0
    %180 = vmatpush2.bf16.msra.mxu0 0
    %181 = vmatprep.subr.bf16.mxu0 0
    %182 = vmatpush2.bf16.msra.mxu0 0
    %183 = vmatprep.subr.bf16.mxu0 0
    %184 = vmatpush2.bf16.msra.mxu0 0
    %185 = vmatprep.subr.bf16.mxu0 0
    %186 = vmatpush2.bf16.msra.mxu0 0
    %187 = vmatprep.mubr.bf16.mxu0 0
    %188 = vmatmul.mubr.bf16.gmra.mxu0 %v153
    %v189 = vpop.f32.mrf.mxu0
    %v190 = vadd.f32 0.0, %v189
    %v191 = vpop.f32.mrf.mxu0
    %v192 = vpop.f32.mrf.mxu0
    %v193 = vadd.f32 0.0, %v192
    %v194 = vpop.f32.mrf.mxu0
    %195 = vdwg.mxu0
    %v196 = vmul.f32 %v190, 0.35355338
    %v197 = vmul.f32 %v193, 0.35355338
    %v198 = vpack.c.bf16 %v196, %v196
    %v199 = vpack.c.bf16 %v197, %v197
    %v200 = vpack.c.bf16 %v190, %v190
    %v201 = vpack.c.bf16 %v193, %v193
    %203 = vrot.lane.b32.xlu0 %v200, 96
    %v204 = vpop.permute.xlu0 %203
    %vm205 = vcmask 64512
    %v207 = vsel %vm205, %v198, 0
    %v210 = vsel %vm205, %v204, 0
    %212 = vmatprep.subr.bf16.mxu0 0
    %213 = vmatpush1.bf16.xpose.msra.mxu0 0
    %214 = vmatprep.subr.bf16.mxu0 0
    %215 = vmatpush1.bf16.xpose.msra.mxu0 0
    %216 = vmatprep.subr.bf16.mxu0 0
    %217 = vmatpush1.bf16.xpose.msra.mxu0 0
    %218 = vmatprep.subr.bf16.mxu0 0
    %219 = vmatpush1.bf16.xpose.msra.mxu0 0
    %220 = vmatprep.subr.bf16.mxu0 0
    %221 = vmatpush1.bf16.xpose.msra.mxu0 0
    %222 = vmatprep.subr.bf16.mxu0 0
    %223 = vmatpush1.bf16.xpose.msra.mxu0 0
    %224 = vmatprep.subr.bf16.mxu0 0
    %225 = vmatpush1.bf16.xpose.msra.mxu0 0
    %226 = vmatprep.subr.bf16.mxu0 0
    %227 = vmatpush1.bf16.xpose.msra.mxu0 %v210
    %228 = vmatprep.subr.bf16.mxu0 0
    %229 = vmatpush2.bf16.xpose.msra.mxu0 0
    %230 = vmatprep.subr.bf16.mxu0 0
    %231 = vmatpush2.bf16.xpose.msra.mxu0 0
    %232 = vmatprep.subr.bf16.mxu0 0
    %233 = vmatpush2.bf16.xpose.msra.mxu0 0
    %234 = vmatprep.subr.bf16.mxu0 0
    %235 = vmatpush2.bf16.xpose.msra.mxu0 0
    %236 = vmatprep.subr.bf16.mxu0 0
    %237 = vmatpush2.bf16.xpose.msra.mxu0 0
    %238 = vmatprep.subr.bf16.mxu0 0
    %239 = vmatpush2.bf16.xpose.msra.mxu0 0
    %240 = vmatprep.subr.bf16.mxu0 0
    %241 = vmatpush2.bf16.xpose.msra.mxu0 0
    %242 = vmatprep.subr.bf16.mxu0 0
    %243 = vmatpush2.bf16.xpose.msra.mxu0 0
    %244 = vmatprep.mubr.bf16.mxu0 0
    %245 = vmatmul.mubr.bf16.gmra.mxu0 %v207
    %v246 = vpop.f32.mrf.mxu0
    %v247 = vadd.f32 0.0, %v246
    %v248 = vpop.f32.mrf.mxu0
    %v249 = vpop.f32.mrf.mxu0
    %v250 = vpop.f32.mrf.mxu0
    %251 = vdwg.mxu0
    %253 = vrot.lane.b32.xlu0 %v201, 96
    %v254 = vpop.permute.xlu0 %253
    %v256 = vsel %vm205, %v199, 0
    %v259 = vsel %vm205, %v254, 0
    %261 = vmatprep.subr.bf16.mxu0 0
    %262 = vmatpush1.bf16.xpose.msra.mxu0 0
    %263 = vmatprep.subr.bf16.mxu0 0
    %264 = vmatpush1.bf16.xpose.msra.mxu0 0
    %265 = vmatprep.subr.bf16.mxu0 0
    %266 = vmatpush1.bf16.xpose.msra.mxu0 0
    %267 = vmatprep.subr.bf16.mxu0 0
    %268 = vmatpush1.bf16.xpose.msra.mxu0 0
    %269 = vmatprep.subr.bf16.mxu0 0
    %270 = vmatpush1.bf16.xpose.msra.mxu0 0
    %271 = vmatprep.subr.bf16.mxu0 0
    %272 = vmatpush1.bf16.xpose.msra.mxu0 0
    %273 = vmatprep.subr.bf16.mxu0 0
    %274 = vmatpush1.bf16.xpose.msra.mxu0 0
    %275 = vmatprep.subr.bf16.mxu0 0
    %276 = vmatpush1.bf16.xpose.msra.mxu0 %v259
    %277 = vmatprep.subr.bf16.mxu0 0
    %278 = vmatpush2.bf16.xpose.msra.mxu0 0
    %279 = vmatprep.subr.bf16.mxu0 0
    %280 = vmatpush2.bf16.xpose.msra.mxu0 0
    %281 = vmatprep.subr.bf16.mxu0 0
    %282 = vmatpush2.bf16.xpose.msra.mxu0 0
    %283 = vmatprep.subr.bf16.mxu0 0
    %284 = vmatpush2.bf16.xpose.msra.mxu0 0
    %285 = vmatprep.subr.bf16.mxu0 0
    %286 = vmatpush2.bf16.xpose.msra.mxu0 0
    %287 = vmatprep.subr.bf16.mxu0 0
    %288 = vmatpush2.bf16.xpose.msra.mxu0 0
    %289 = vmatprep.subr.bf16.mxu0 0
    %290 = vmatpush2.bf16.xpose.msra.mxu0 0
    %291 = vmatprep.subr.bf16.mxu0 0
    %292 = vmatpush2.bf16.xpose.msra.mxu0 0
    %293 = vmatprep.mubr.bf16.mxu0 0
    %294 = vmatmul.mubr.bf16.gmra.mxu0 %v256
    %v295 = vpop.f32.mrf.mxu0
    %v296 = vadd.f32 0.0, %v295
    %v297 = vpop.f32.mrf.mxu0
    %v298 = vpop.f32.mrf.mxu0
    %v299 = vpop.f32.mrf.mxu0
    %300 = vdwg.mxu0
    %v301 = vsel %vm132, %v247, 1e-06
    %v302 = vsel %vm133, %v296, 1e-06
    %v303 = vsel %vm205, %v301, -inf
    %304 = vmax.xlane.f32.xlu0 %v303
    %v305 = vpop.xlane.xlu0 %304
    %v306 = vsel %vm205, %v302, -inf
    %307 = vmax.xlane.f32.xlu0 %v306
    %v308 = vpop.xlane.xlu0 %307
    %v309 = vsub.f32 %v301, %v305
    %v310 = vsub.f32 %v302, %v308
    %v311 = vmul.f32 %v309, 1.442695
    %v312 = vpow.pop %v311
    %v313 = vmul.f32 %v310, 1.442695
    %v314 = vpow.pop %v313
    %v315 = vsel %vm205, %v312, 0.0
    %316 = vadd.xlane.f32.xlu0 %v315
    %v317 = vpop.xlane.xlu0 %316
    %v318 = vsel %vm205, %v314, 0.0
    %319 = vadd.xlane.f32.xlu0 %v318
    %v320 = vpop.xlane.xlu0 %319
    %v321 = vrcp.pop %v317
    %v322 = vrcp.pop %v320
    %v323 = vmul.f32 %v312, %v321
    %v324 = vmul.f32 %v314, %v322
    %v325 = vpack.c.bf16 %v323, %v323
    %v326 = vpack.c.bf16 %v324, %v324
    %327 = vrot.lane.b32.xlu0 %v200, 64
    %v328 = vpop.permute.xlu0 %327
    %v330 = vsel %vm205, %v325, 0
    %vm332 = vcmask 1043456
    %v334 = vsel %vm332, %v328, 0
    %336 = vmatprep.subr.bf16.mxu0 0
    %337 = vmatpush1.bf16.msra.mxu0 0
    %338 = vmatprep.subr.bf16.mxu0 0
    %339 = vmatpush1.bf16.msra.mxu0 0
    %340 = vmatprep.subr.bf16.mxu0 0
    %341 = vmatpush1.bf16.msra.mxu0 0
    %342 = vmatprep.subr.bf16.mxu0 0
    %343 = vmatpush1.bf16.msra.mxu0 0
    %344 = vmatprep.subr.bf16.mxu0 0
    %345 = vmatpush1.bf16.msra.mxu0 0
    %346 = vmatprep.subr.bf16.mxu0 0
    %347 = vmatpush1.bf16.msra.mxu0 0
    %348 = vmatprep.subr.bf16.mxu0 0
    %349 = vmatpush1.bf16.msra.mxu0 0
    %350 = vmatprep.subr.bf16.mxu0 0
    %351 = vmatpush1.bf16.msra.mxu0 %v334
    %352 = vmatprep.subr.bf16.mxu0 0
    %353 = vmatpush2.bf16.msra.mxu0 0
    %354 = vmatprep.subr.bf16.mxu0 0
    %355 = vmatpush2.bf16.msra.mxu0 0
    %356 = vmatprep.subr.bf16.mxu0 0
    %357 = vmatpush2.bf16.msra.mxu0 0
    %358 = vmatprep.subr.bf16.mxu0 0
    %359 = vmatpush2.bf16.msra.mxu0 0
    %360 = vmatprep.subr.bf16.mxu0 0
    %361 = vmatpush2.bf16.msra.mxu0 0
    %362 = vmatprep.subr.bf16.mxu0 0
    %363 = vmatpush2.bf16.msra.mxu0 0
    %364 = vmatprep.subr.bf16.mxu0 0
    %365 = vmatpush2.bf16.msra.mxu0 0
    %366 = vmatprep.subr.bf16.mxu0 0
    %367 = vmatpush2.bf16.msra.mxu0 0
    %368 = vmatprep.mubr.bf16.mxu0 0
    %369 = vmatmul.mubr.bf16.gmra.mxu0 %v330
    %v370 = vpop.f32.mrf.mxu0
    %v371 = vadd.f32 0.0, %v370
    %v372 = vpop.f32.mrf.mxu0
    %v373 = vpop.f32.mrf.mxu0
    %v374 = vpop.f32.mrf.mxu0
    %375 = vdwg.mxu0
    %376 = vrot.lane.b32.xlu0 %v201, 64
    %v377 = vpop.permute.xlu0 %376
    %v379 = vsel %vm205, %v326, 0
    %v382 = vsel %vm332, %v377, 0
    %384 = vmatprep.subr.bf16.mxu0 0
    %385 = vmatpush1.bf16.msra.mxu0 0
    %386 = vmatprep.subr.bf16.mxu0 0
    %387 = vmatpush1.bf16.msra.mxu0 0
    %388 = vmatprep.subr.bf16.mxu0 0
    %389 = vmatpush1.bf16.msra.mxu0 0
    %390 = vmatprep.subr.bf16.mxu0 0
    %391 = vmatpush1.bf16.msra.mxu0 0
    %392 = vmatprep.subr.bf16.mxu0 0
    %393 = vmatpush1.bf16.msra.mxu0 0
    %394 = vmatprep.subr.bf16.mxu0 0
    %395 = vmatpush1.bf16.msra.mxu0 0
    %396 = vmatprep.subr.bf16.mxu0 0
    %397 = vmatpush1.bf16.msra.mxu0 0
    %398 = vmatprep.subr.bf16.mxu0 0
    %399 = vmatpush1.bf16.msra.mxu0 %v382
    %400 = vmatprep.subr.bf16.mxu0 0
    %401 = vmatpush2.bf16.msra.mxu0 0
    %402 = vmatprep.subr.bf16.mxu0 0
    %403 = vmatpush2.bf16.msra.mxu0 0
    %404 = vmatprep.subr.bf16.mxu0 0
    %405 = vmatpush2.bf16.msra.mxu0 0
    %406 = vmatprep.subr.bf16.mxu0 0
    %407 = vmatpush2.bf16.msra.mxu0 0
    %408 = vmatprep.subr.bf16.mxu0 0
    %409 = vmatpush2.bf16.msra.mxu0 0
    %410 = vmatprep.subr.bf16.mxu0 0
    %411 = vmatpush2.bf16.msra.mxu0 0
    %412 = vmatprep.subr.bf16.mxu0 0
    %413 = vmatpush2.bf16.msra.mxu0 0
    %414 = vmatprep.subr.bf16.mxu0 0
    %415 = vmatpush2.bf16.msra.mxu0 0
    %416 = vmatprep.mubr.bf16.mxu0 0
    %417 = vmatmul.mubr.bf16.gmra.mxu0 %v379
    %v418 = vpop.f32.mrf.mxu0
    %v419 = vadd.f32 0.0, %v418
    %v420 = vpop.f32.mrf.mxu0
    %v421 = vpop.f32.mrf.mxu0
    %v422 = vpop.f32.mrf.mxu0
    %423 = vdwg.mxu0
    %425 = vrot.lane.b32.xlu0 %v198, 120
    %v426 = vpop.permute.xlu0 %425
    %427 = vrot.lane.b32.xlu0 %v200, 88
    %v428 = vpop.permute.xlu0 %427
    %v430 = vsel %vm205, %v426, 0
    %v433 = vsel %vm205, %v428, 0
    %435 = vmatprep.subr.bf16.mxu0 0
    %436 = vmatpush1.bf16.xpose.msra.mxu0 0
    %437 = vmatprep.subr.bf16.mxu0 0
    %438 = vmatpush1.bf16.xpose.msra.mxu0 0
    %439 = vmatprep.subr.bf16.mxu0 0
    %440 = vmatpush1.bf16.xpose.msra.mxu0 0
    %441 = vmatprep.subr.bf16.mxu0 0
    %442 = vmatpush1.bf16.xpose.msra.mxu0 0
    %443 = vmatprep.subr.bf16.mxu0 0
    %444 = vmatpush1.bf16.xpose.msra.mxu0 0
    %445 = vmatprep.subr.bf16.mxu0 0
    %446 = vmatpush1.bf16.xpose.msra.mxu0 0
    %447 = vmatprep.subr.bf16.mxu0 0
    %448 = vmatpush1.bf16.xpose.msra.mxu0 0
    %449 = vmatprep.subr.bf16.mxu0 0
    %450 = vmatpush1.bf16.xpose.msra.mxu0 %v433
    %451 = vmatprep.subr.bf16.mxu0 0
    %452 = vmatpush2.bf16.xpose.msra.mxu0 0
    %453 = vmatprep.subr.bf16.mxu0 0
    %454 = vmatpush2.bf16.xpose.msra.mxu0 0
    %455 = vmatprep.subr.bf16.mxu0 0
    %456 = vmatpush2.bf16.xpose.msra.mxu0 0
    %457 = vmatprep.subr.bf16.mxu0 0
    %458 = vmatpush2.bf16.xpose.msra.mxu0 0
    %459 = vmatprep.subr.bf16.mxu0 0
    %460 = vmatpush2.bf16.xpose.msra.mxu0 0
    %461 = vmatprep.subr.bf16.mxu0 0
    %462 = vmatpush2.bf16.xpose.msra.mxu0 0
    %463 = vmatprep.subr.bf16.mxu0 0
    %464 = vmatpush2.bf16.xpose.msra.mxu0 0
    %465 = vmatprep.subr.bf16.mxu0 0
    %466 = vmatpush2.bf16.xpose.msra.mxu0 0
    %467 = vmatprep.mubr.bf16.mxu0 0
    %468 = vmatmul.mubr.bf16.gmra.mxu0 %v430
    %v469 = vpop.f32.mrf.mxu0
    %v470 = vadd.f32 0.0, %v469
    %v471 = vpop.f32.mrf.mxu0
    %v472 = vpop.f32.mrf.mxu0
    %v473 = vpop.f32.mrf.mxu0
    %474 = vdwg.mxu0
    %476 = vrot.lane.b32.xlu0 %v199, 120
    %v477 = vpop.permute.xlu0 %476
    %478 = vrot.lane.b32.xlu0 %v201, 88
    %v479 = vpop.permute.xlu0 %478
    %v481 = vsel %vm205, %v477, 0
    %v484 = vsel %vm205, %v479, 0
    %486 = vmatprep.subr.bf16.mxu0 0
    %487 = vmatpush1.bf16.xpose.msra.mxu0 0
    %488 = vmatprep.subr.bf16.mxu0 0
    %489 = vmatpush1.bf16.xpose.msra.mxu0 0
    %490 = vmatprep.subr.bf16.mxu0 0
    %491 = vmatpush1.bf16.xpose.msra.mxu0 0
    %492 = vmatprep.subr.bf16.mxu0 0
    %493 = vmatpush1.bf16.xpose.msra.mxu0 0
    %494 = vmatprep.subr.bf16.mxu0 0
    %495 = vmatpush1.bf16.xpose.msra.mxu0 0
    %496 = vmatprep.subr.bf16.mxu0 0
    %497 = vmatpush1.bf16.xpose.msra.mxu0 0
    %498 = vmatprep.subr.bf16.mxu0 0
    %499 = vmatpush1.bf16.xpose.msra.mxu0 0
    %500 = vmatprep.subr.bf16.mxu0 0
    %501 = vmatpush1.bf16.xpose.msra.mxu0 %v484
    %502 = vmatprep.subr.bf16.mxu0 0
    %503 = vmatpush2.bf16.xpose.msra.mxu0 0
    %504 = vmatprep.subr.bf16.mxu0 0
    %505 = vmatpush2.bf16.xpose.msra.mxu0 0
    %506 = vmatprep.subr.bf16.mxu0 0
    %507 = vmatpush2.bf16.xpose.msra.mxu0 0
    %508 = vmatprep.subr.bf16.mxu0 0
    %509 = vmatpush2.bf16.xpose.msra.mxu0 0
    %510 = vmatprep.subr.bf16.mxu0 0
    %511 = vmatpush2.bf16.xpose.msra.mxu0 0
    %512 = vmatprep.subr.bf16.mxu0 0
    %513 = vmatpush2.bf16.xpose.msra.mxu0 0
    %514 = vmatprep.subr.bf16.mxu0 0
    %515 = vmatpush2.bf16.xpose.msra.mxu0 0
    %516 = vmatprep.subr.bf16.mxu0 0
    %517 = vmatpush2.bf16.xpose.msra.mxu0 0
    %518 = vmatprep.mubr.bf16.mxu0 0
    %519 = vmatmul.mubr.bf16.gmra.mxu0 %v481
    %v520 = vpop.f32.mrf.mxu0
    %v521 = vadd.f32 0.0, %v520
    %v522 = vpop.f32.mrf.mxu0
    %v523 = vpop.f32.mrf.mxu0
    %v524 = vpop.f32.mrf.mxu0
    %525 = vdwg.mxu0
    %v526 = vsel %vm132, %v470, 1e-06
    %v527 = vsel %vm133, %v521, 1e-06
    %v528 = vsel %vm205, %v526, -inf
    %529 = vmax.xlane.f32.xlu0 %v528
    %v530 = vpop.xlane.xlu0 %529
    %v531 = vsel %vm205, %v527, -inf
    %532 = vmax.xlane.f32.xlu0 %v531
    %v533 = vpop.xlane.xlu0 %532
    %v534 = vsub.f32 %v526, %v530
    %v535 = vsub.f32 %v527, %v533
    %v536 = vmul.f32 %v534, 1.442695
    %v537 = vpow.pop %v536
    %v538 = vmul.f32 %v535, 1.442695
    %v539 = vpow.pop %v538
    %v540 = vsel %vm205, %v537, 0.0
    %541 = vadd.xlane.f32.xlu0 %v540
    %v542 = vpop.xlane.xlu0 %541
    %v543 = vsel %vm205, %v539, 0.0
    %544 = vadd.xlane.f32.xlu0 %v543
    %v545 = vpop.xlane.xlu0 %544
    %v546 = vrcp.pop %v542
    %v547 = vrcp.pop %v545
    %v548 = vmul.f32 %v537, %v546
    %v549 = vmul.f32 %v539, %v547
    %v550 = vpack.c.bf16 %v548, %v548
    %v551 = vpack.c.bf16 %v549, %v549
    %552 = vrot.lane.b32.xlu0 %v200, 56
    %v553 = vpop.permute.xlu0 %552
    %v555 = vsel %vm205, %v550, 0
    %v558 = vsel %vm332, %v553, 0
    %560 = vmatprep.subr.bf16.mxu0 0
    %561 = vmatpush1.bf16.msra.mxu0 0
    %562 = vmatprep.subr.bf16.mxu0 0
    %563 = vmatpush1.bf16.msra.mxu0 0
    %564 = vmatprep.subr.bf16.mxu0 0
    %565 = vmatpush1.bf16.msra.mxu0 0
    %566 = vmatprep.subr.bf16.mxu0 0
    %567 = vmatpush1.bf16.msra.mxu0 0
    %568 = vmatprep.subr.bf16.mxu0 0
    %569 = vmatpush1.bf16.msra.mxu0 0
    %570 = vmatprep.subr.bf16.mxu0 0
    %571 = vmatpush1.bf16.msra.mxu0 0
    %572 = vmatprep.subr.bf16.mxu0 0
    %573 = vmatpush1.bf16.msra.mxu0 0
    %574 = vmatprep.subr.bf16.mxu0 0
    %575 = vmatpush1.bf16.msra.mxu0 %v558
    %576 = vmatprep.subr.bf16.mxu0 0
    %577 = vmatpush2.bf16.msra.mxu0 0
    %578 = vmatprep.subr.bf16.mxu0 0
    %579 = vmatpush2.bf16.msra.mxu0 0
    %580 = vmatprep.subr.bf16.mxu0 0
    %581 = vmatpush2.bf16.msra.mxu0 0
    %582 = vmatprep.subr.bf16.mxu0 0
    %583 = vmatpush2.bf16.msra.mxu0 0
    %584 = vmatprep.subr.bf16.mxu0 0
    %585 = vmatpush2.bf16.msra.mxu0 0
    %586 = vmatprep.subr.bf16.mxu0 0
    %587 = vmatpush2.bf16.msra.mxu0 0
    %588 = vmatprep.subr.bf16.mxu0 0
    %589 = vmatpush2.bf16.msra.mxu0 0
    %590 = vmatprep.subr.bf16.mxu0 0
    %591 = vmatpush2.bf16.msra.mxu0 0
    %592 = vmatprep.mubr.bf16.mxu0 0
    %593 = vmatmul.mubr.bf16.gmra.mxu0 %v555
    %v594 = vpop.f32.mrf.mxu0
    %v595 = vadd.f32 0.0, %v594
    %v596 = vpop.f32.mrf.mxu0
    %v597 = vpop.f32.mrf.mxu0
    %v598 = vpop.f32.mrf.mxu0
    %599 = vdwg.mxu0
    %600 = vrot.lane.b32.xlu0 %v201, 56
    %v601 = vpop.permute.xlu0 %600
    %v603 = vsel %vm205, %v551, 0
    %v606 = vsel %vm332, %v601, 0
    %608 = vmatprep.subr.bf16.mxu0 0
    %609 = vmatpush1.bf16.msra.mxu0 0
    %610 = vmatprep.subr.bf16.mxu0 0
    %611 = vmatpush1.bf16.msra.mxu0 0
    %612 = vmatprep.subr.bf16.mxu0 0
    %613 = vmatpush1.bf16.msra.mxu0 0
    %614 = vmatprep.subr.bf16.mxu0 0
    %615 = vmatpush1.bf16.msra.mxu0 0
    %616 = vmatprep.subr.bf16.mxu0 0
    %617 = vmatpush1.bf16.msra.mxu0 0
    %618 = vmatprep.subr.bf16.mxu0 0
    %619 = vmatpush1.bf16.msra.mxu0 0
    %620 = vmatprep.subr.bf16.mxu0 0
    %621 = vmatpush1.bf16.msra.mxu0 0
    %622 = vmatprep.subr.bf16.mxu0 0
    %623 = vmatpush1.bf16.msra.mxu0 %v606
    %624 = vmatprep.subr.bf16.mxu0 0
    %625 = vmatpush2.bf16.msra.mxu0 0
    %626 = vmatprep.subr.bf16.mxu0 0
    %627 = vmatpush2.bf16.msra.mxu0 0
    %628 = vmatprep.subr.bf16.mxu0 0
    %629 = vmatpush2.bf16.msra.mxu0 0
    %630 = vmatprep.subr.bf16.mxu0 0
    %631 = vmatpush2.bf16.msra.mxu0 0
    %632 = vmatprep.subr.bf16.mxu0 0
    %633 = vmatpush2.bf16.msra.mxu0 0
    %634 = vmatprep.subr.bf16.mxu0 0
    %635 = vmatpush2.bf16.msra.mxu0 0
    %636 = vmatprep.subr.bf16.mxu0 0
    %637 = vmatpush2.bf16.msra.mxu0 0
    %638 = vmatprep.subr.bf16.mxu0 0
    %639 = vmatpush2.bf16.msra.mxu0 0
    %640 = vmatprep.mubr.bf16.mxu0 0
    %641 = vmatmul.mubr.bf16.gmra.mxu0 %v603
    %v642 = vpop.f32.mrf.mxu0
    %v643 = vadd.f32 0.0, %v642
    %v644 = vpop.f32.mrf.mxu0
    %v645 = vpop.f32.mrf.mxu0
    %v646 = vpop.f32.mrf.mxu0
    %647 = vdwg.mxu0
    %648 = vrot.lane.b32.xlu0 %v198, 112
    %v649 = vpop.permute.xlu0 %648
    %650 = vrot.lane.b32.xlu0 %v200, 80
    %v651 = vpop.permute.xlu0 %650
    %v653 = vsel %vm205, %v649, 0
    %v656 = vsel %vm205, %v651, 0
    %658 = vmatprep.subr.bf16.mxu0 0
    %659 = vmatpush1.bf16.xpose.msra.mxu0 0
    %660 = vmatprep.subr.bf16.mxu0 0
    %661 = vmatpush1.bf16.xpose.msra.mxu0 0
    %662 = vmatprep.subr.bf16.mxu0 0
    %663 = vmatpush1.bf16.xpose.msra.mxu0 0
    %664 = vmatprep.subr.bf16.mxu0 0
    %665 = vmatpush1.bf16.xpose.msra.mxu0 0
    %666 = vmatprep.subr.bf16.mxu0 0
    %667 = vmatpush1.bf16.xpose.msra.mxu0 0
    %668 = vmatprep.subr.bf16.mxu0 0
    %669 = vmatpush1.bf16.xpose.msra.mxu0 0
    %670 = vmatprep.subr.bf16.mxu0 0
    %671 = vmatpush1.bf16.xpose.msra.mxu0 0
    %672 = vmatprep.subr.bf16.mxu0 0
    %673 = vmatpush1.bf16.xpose.msra.mxu0 %v656
    %674 = vmatprep.subr.bf16.mxu0 0
    %675 = vmatpush2.bf16.xpose.msra.mxu0 0
    %676 = vmatprep.subr.bf16.mxu0 0
    %677 = vmatpush2.bf16.xpose.msra.mxu0 0
    %678 = vmatprep.subr.bf16.mxu0 0
    %679 = vmatpush2.bf16.xpose.msra.mxu0 0
    %680 = vmatprep.subr.bf16.mxu0 0
    %681 = vmatpush2.bf16.xpose.msra.mxu0 0
    %682 = vmatprep.subr.bf16.mxu0 0
    %683 = vmatpush2.bf16.xpose.msra.mxu0 0
    %684 = vmatprep.subr.bf16.mxu0 0
    %685 = vmatpush2.bf16.xpose.msra.mxu0 0
    %686 = vmatprep.subr.bf16.mxu0 0
    %687 = vmatpush2.bf16.xpose.msra.mxu0 0
    %688 = vmatprep.subr.bf16.mxu0 0
    %689 = vmatpush2.bf16.xpose.msra.mxu0 0
    %690 = vmatprep.mubr.bf16.mxu0 0
    %691 = vmatmul.mubr.bf16.gmra.mxu0 %v653
    %v692 = vpop.f32.mrf.mxu0
    %v693 = vadd.f32 0.0, %v692
    %v694 = vpop.f32.mrf.mxu0
    %v695 = vpop.f32.mrf.mxu0
    %v696 = vpop.f32.mrf.mxu0
    %697 = vdwg.mxu0
    %698 = vrot.lane.b32.xlu0 %v199, 112
    %v699 = vpop.permute.xlu0 %698
    %700 = vrot.lane.b32.xlu0 %v201, 80
    %v701 = vpop.permute.xlu0 %700
    %v703 = vsel %vm205, %v699, 0
    %v706 = vsel %vm205, %v701, 0
    %708 = vmatprep.subr.bf16.mxu0 0
    %709 = vmatpush1.bf16.xpose.msra.mxu0 0
    %710 = vmatprep.subr.bf16.mxu0 0
    %711 = vmatpush1.bf16.xpose.msra.mxu0 0
    %712 = vmatprep.subr.bf16.mxu0 0
    %713 = vmatpush1.bf16.xpose.msra.mxu0 0
    %714 = vmatprep.subr.bf16.mxu0 0
    %715 = vmatpush1.bf16.xpose.msra.mxu0 0
    %716 = vmatprep.subr.bf16.mxu0 0
    %717 = vmatpush1.bf16.xpose.msra.mxu0 0
    %718 = vmatprep.subr.bf16.mxu0 0
    %719 = vmatpush1.bf16.xpose.msra.mxu0 0
    %720 = vmatprep.subr.bf16.mxu0 0
    %721 = vmatpush1.bf16.xpose.msra.mxu0 0
    %722 = vmatprep.subr.bf16.mxu0 0
    %723 = vmatpush1.bf16.xpose.msra.mxu0 %v706
    %724 = vmatprep.subr.bf16.mxu0 0
    %725 = vmatpush2.bf16.xpose.msra.mxu0 0
    %726 = vmatprep.subr.bf16.mxu0 0
    %727 = vmatpush2.bf16.xpose.msra.mxu0 0
    %728 = vmatprep.subr.bf16.mxu0 0
    %729 = vmatpush2.bf16.xpose.msra.mxu0 0
    %730 = vmatprep.subr.bf16.mxu0 0
    %731 = vmatpush2.bf16.xpose.msra.mxu0 0
    %732 = vmatprep.subr.bf16.mxu0 0
    %733 = vmatpush2.bf16.xpose.msra.mxu0 0
    %734 = vmatprep.subr.bf16.mxu0 0
    %735 = vmatpush2.bf16.xpose.msra.mxu0 0
    %736 = vmatprep.subr.bf16.mxu0 0
    %737 = vmatpush2.bf16.xpose.msra.mxu0 0
    %738 = vmatprep.subr.bf16.mxu0 0
    %739 = vmatpush2.bf16.xpose.msra.mxu0 0
    %740 = vmatprep.mubr.bf16.mxu0 0
    %741 = vmatmul.mubr.bf16.gmra.mxu0 %v703
    %v742 = vpop.f32.mrf.mxu0
    %v743 = vadd.f32 0.0, %v742
    %v744 = vpop.f32.mrf.mxu0
    %v745 = vpop.f32.mrf.mxu0
    %v746 = vpop.f32.mrf.mxu0
    %747 = vdwg.mxu0
    %v748 = vsel %vm132, %v693, 1e-06
    %v749 = vsel %vm133, %v743, 1e-06
    %v750 = vsel %vm205, %v748, -inf
    %751 = vmax.xlane.f32.xlu0 %v750
    %v752 = vpop.xlane.xlu0 %751
    %v753 = vsel %vm205, %v749, -inf
    %754 = vmax.xlane.f32.xlu0 %v753
    %v755 = vpop.xlane.xlu0 %754
    %v756 = vsub.f32 %v748, %v752
    %v757 = vsub.f32 %v749, %v755
    %v758 = vmul.f32 %v756, 1.442695
    %v759 = vpow.pop %v758
    %v760 = vmul.f32 %v757, 1.442695
    %v761 = vpow.pop %v760
    %v762 = vsel %vm205, %v759, 0.0
    %763 = vadd.xlane.f32.xlu0 %v762
    %v764 = vpop.xlane.xlu0 %763
    %v765 = vsel %vm205, %v761, 0.0
    %766 = vadd.xlane.f32.xlu0 %v765
    %v767 = vpop.xlane.xlu0 %766
    %v768 = vrcp.pop %v764
    %v769 = vrcp.pop %v767
    %v770 = vmul.f32 %v759, %v768
    %v771 = vmul.f32 %v761, %v769
    %v772 = vpack.c.bf16 %v770, %v770
    %v773 = vpack.c.bf16 %v771, %v771
    %774 = vrot.lane.b32.xlu0 %v200, 48
    %v775 = vpop.permute.xlu0 %774
    %v777 = vsel %vm205, %v772, 0
    %v780 = vsel %vm332, %v775, 0
    %782 = vmatprep.subr.bf16.mxu0 0
    %783 = vmatpush1.bf16.msra.mxu0 0
    %784 = vmatprep.subr.bf16.mxu0 0
    %785 = vmatpush1.bf16.msra.mxu0 0
    %786 = vmatprep.subr.bf16.mxu0 0
    %787 = vmatpush1.bf16.msra.mxu0 0
    %788 = vmatprep.subr.bf16.mxu0 0
    %789 = vmatpush1.bf16.msra.mxu0 0
    %790 = vmatprep.subr.bf16.mxu0 0
    %791 = vmatpush1.bf16.msra.mxu0 0
    %792 = vmatprep.subr.bf16.mxu0 0
    %793 = vmatpush1.bf16.msra.mxu0 0
    %794 = vmatprep.subr.bf16.mxu0 0
    %795 = vmatpush1.bf16.msra.mxu0 0
    %796 = vmatprep.subr.bf16.mxu0 0
    %797 = vmatpush1.bf16.msra.mxu0 %v780
    %798 = vmatprep.subr.bf16.mxu0 0
    %799 = vmatpush2.bf16.msra.mxu0 0
    %800 = vmatprep.subr.bf16.mxu0 0
    %801 = vmatpush2.bf16.msra.mxu0 0
    %802 = vmatprep.subr.bf16.mxu0 0
    %803 = vmatpush2.bf16.msra.mxu0 0
    %804 = vmatprep.subr.bf16.mxu0 0
    %805 = vmatpush2.bf16.msra.mxu0 0
    %806 = vmatprep.subr.bf16.mxu0 0
    %807 = vmatpush2.bf16.msra.mxu0 0
    %808 = vmatprep.subr.bf16.mxu0 0
    %809 = vmatpush2.bf16.msra.mxu0 0
    %810 = vmatprep.subr.bf16.mxu0 0
    %811 = vmatpush2.bf16.msra.mxu0 0
    %812 = vmatprep.subr.bf16.mxu0 0
    %813 = vmatpush2.bf16.msra.mxu0 0
    %814 = vmatprep.mubr.bf16.mxu0 0
    %815 = vmatmul.mubr.bf16.gmra.mxu0 %v777
    %v816 = vpop.f32.mrf.mxu0
    %v817 = vadd.f32 0.0, %v816
    %v818 = vpop.f32.mrf.mxu0
    %v819 = vpop.f32.mrf.mxu0
    %v820 = vpop.f32.mrf.mxu0
    %821 = vdwg.mxu0
    %822 = vrot.lane.b32.xlu0 %v201, 48
    %v823 = vpop.permute.xlu0 %822
    %v825 = vsel %vm205, %v773, 0
    %v828 = vsel %vm332, %v823, 0
    %830 = vmatprep.subr.bf16.mxu0 0
    %831 = vmatpush1.bf16.msra.mxu0 0
    %832 = vmatprep.subr.bf16.mxu0 0
    %833 = vmatpush1.bf16.msra.mxu0 0
    %834 = vmatprep.subr.bf16.mxu0 0
    %835 = vmatpush1.bf16.msra.mxu0 0
    %836 = vmatprep.subr.bf16.mxu0 0
    %837 = vmatpush1.bf16.msra.mxu0 0
    %838 = vmatprep.subr.bf16.mxu0 0
    %839 = vmatpush1.bf16.msra.mxu0 0
    %840 = vmatprep.subr.bf16.mxu0 0
    %841 = vmatpush1.bf16.msra.mxu0 0
    %842 = vmatprep.subr.bf16.mxu0 0
    %843 = vmatpush1.bf16.msra.mxu0 0
    %844 = vmatprep.subr.bf16.mxu0 0
    %845 = vmatpush1.bf16.msra.mxu0 %v828
    %846 = vmatprep.subr.bf16.mxu0 0
    %847 = vmatpush2.bf16.msra.mxu0 0
    %848 = vmatprep.subr.bf16.mxu0 0
    %849 = vmatpush2.bf16.msra.mxu0 0
    %850 = vmatprep.subr.bf16.mxu0 0
    %851 = vmatpush2.bf16.msra.mxu0 0
    %852 = vmatprep.subr.bf16.mxu0 0
    %853 = vmatpush2.bf16.msra.mxu0 0
    %854 = vmatprep.subr.bf16.mxu0 0
    %855 = vmatpush2.bf16.msra.mxu0 0
    %856 = vmatprep.subr.bf16.mxu0 0
    %857 = vmatpush2.bf16.msra.mxu0 0
    %858 = vmatprep.subr.bf16.mxu0 0
    %859 = vmatpush2.bf16.msra.mxu0 0
    %860 = vmatprep.subr.bf16.mxu0 0
    %861 = vmatpush2.bf16.msra.mxu0 0
    %862 = vmatprep.mubr.bf16.mxu0 0
    %863 = vmatmul.mubr.bf16.gmra.mxu0 %v825
    %v864 = vpop.f32.mrf.mxu0
    %v865 = vadd.f32 0.0, %v864
    %v866 = vpop.f32.mrf.mxu0
    %v867 = vpop.f32.mrf.mxu0
    %v868 = vpop.f32.mrf.mxu0
    %869 = vdwg.mxu0
    %870 = vrot.lane.b32.xlu0 %v198, 104
    %v871 = vpop.permute.xlu0 %870
    %872 = vrot.lane.b32.xlu0 %v200, 72
    %v873 = vpop.permute.xlu0 %872
    %v875 = vsel %vm205, %v871, 0
    %v878 = vsel %vm205, %v873, 0
    %880 = vmatprep.subr.bf16.mxu0 0
    %881 = vmatpush1.bf16.xpose.msra.mxu0 0
    %882 = vmatprep.subr.bf16.mxu0 0
    %883 = vmatpush1.bf16.xpose.msra.mxu0 0
    %884 = vmatprep.subr.bf16.mxu0 0
    %885 = vmatpush1.bf16.xpose.msra.mxu0 0
    %886 = vmatprep.subr.bf16.mxu0 0
    %887 = vmatpush1.bf16.xpose.msra.mxu0 0
    %888 = vmatprep.subr.bf16.mxu0 0
    %889 = vmatpush1.bf16.xpose.msra.mxu0 0
    %890 = vmatprep.subr.bf16.mxu0 0
    %891 = vmatpush1.bf16.xpose.msra.mxu0 0
    %892 = vmatprep.subr.bf16.mxu0 0
    %893 = vmatpush1.bf16.xpose.msra.mxu0 0
    %894 = vmatprep.subr.bf16.mxu0 0
    %895 = vmatpush1.bf16.xpose.msra.mxu0 %v878
    %896 = vmatprep.subr.bf16.mxu0 0
    %897 = vmatpush2.bf16.xpose.msra.mxu0 0
    %898 = vmatprep.subr.bf16.mxu0 0
    %899 = vmatpush2.bf16.xpose.msra.mxu0 0
    %900 = vmatprep.subr.bf16.mxu0 0
    %901 = vmatpush2.bf16.xpose.msra.mxu0 0
    %902 = vmatprep.subr.bf16.mxu0 0
    %903 = vmatpush2.bf16.xpose.msra.mxu0 0
    %904 = vmatprep.subr.bf16.mxu0 0
    %905 = vmatpush2.bf16.xpose.msra.mxu0 0
    %906 = vmatprep.subr.bf16.mxu0 0
    %907 = vmatpush2.bf16.xpose.msra.mxu0 0
    %908 = vmatprep.subr.bf16.mxu0 0
    %909 = vmatpush2.bf16.xpose.msra.mxu0 0
    %910 = vmatprep.subr.bf16.mxu0 0
    %911 = vmatpush2.bf16.xpose.msra.mxu0 0
    %912 = vmatprep.mubr.bf16.mxu0 0
    %913 = vmatmul.mubr.bf16.gmra.mxu0 %v875
    %v914 = vpop.f32.mrf.mxu0
    %v915 = vadd.f32 0.0, %v914
    %v916 = vpop.f32.mrf.mxu0
    %v917 = vpop.f32.mrf.mxu0
    %v918 = vpop.f32.mrf.mxu0
    %919 = vdwg.mxu0
    %920 = vrot.lane.b32.xlu0 %v199, 104
    %v921 = vpop.permute.xlu0 %920
    %922 = vrot.lane.b32.xlu0 %v201, 72
    %v923 = vpop.permute.xlu0 %922
    %v925 = vsel %vm205, %v921, 0
    %v928 = vsel %vm205, %v923, 0
    %930 = vmatprep.subr.bf16.mxu0 0
    %931 = vmatpush1.bf16.xpose.msra.mxu0 0
    %932 = vmatprep.subr.bf16.mxu0 0
    %933 = vmatpush1.bf16.xpose.msra.mxu0 0
    %934 = vmatprep.subr.bf16.mxu0 0
    %935 = vmatpush1.bf16.xpose.msra.mxu0 0
    %936 = vmatprep.subr.bf16.mxu0 0
    %937 = vmatpush1.bf16.xpose.msra.mxu0 0
    %938 = vmatprep.subr.bf16.mxu0 0
    %939 = vmatpush1.bf16.xpose.msra.mxu0 0
    %940 = vmatprep.subr.bf16.mxu0 0
    %941 = vmatpush1.bf16.xpose.msra.mxu0 0
    %942 = vmatprep.subr.bf16.mxu0 0
    %943 = vmatpush1.bf16.xpose.msra.mxu0 0
    %944 = vmatprep.subr.bf16.mxu0 0
    %945 = vmatpush1.bf16.xpose.msra.mxu0 %v928
    %946 = vmatprep.subr.bf16.mxu0 0
    %947 = vmatpush2.bf16.xpose.msra.mxu0 0
    %948 = vmatprep.subr.bf16.mxu0 0
    %949 = vmatpush2.bf16.xpose.msra.mxu0 0
    %950 = vmatprep.subr.bf16.mxu0 0
    %951 = vmatpush2.bf16.xpose.msra.mxu0 0
    %952 = vmatprep.subr.bf16.mxu0 0
    %953 = vmatpush2.bf16.xpose.msra.mxu0 0
    %954 = vmatprep.subr.bf16.mxu0 0
    %955 = vmatpush2.bf16.xpose.msra.mxu0 0
    %956 = vmatprep.subr.bf16.mxu0 0
    %957 = vmatpush2.bf16.xpose.msra.mxu0 0
    %958 = vmatprep.subr.bf16.mxu0 0
    %959 = vmatpush2.bf16.xpose.msra.mxu0 0
    %960 = vmatprep.subr.bf16.mxu0 0
    %961 = vmatpush2.bf16.xpose.msra.mxu0 0
    %962 = vmatprep.mubr.bf16.mxu0 0
    %963 = vmatmul.mubr.bf16.gmra.mxu0 %v925
    %v964 = vpop.f32.mrf.mxu0
    %v965 = vadd.f32 0.0, %v964
    %v966 = vpop.f32.mrf.mxu0
    %v967 = vpop.f32.mrf.mxu0
    %v968 = vpop.f32.mrf.mxu0
    %969 = vdwg.mxu0
    %v970 = vsel %vm132, %v915, 1e-06
    %v971 = vsel %vm133, %v965, 1e-06
    %v972 = vsel %vm205, %v970, -inf
    %973 = vmax.xlane.f32.xlu0 %v972
    %v974 = vpop.xlane.xlu0 %973
    %v975 = vsel %vm205, %v971, -inf
    %976 = vmax.xlane.f32.xlu0 %v975
    %v977 = vpop.xlane.xlu0 %976
    %v978 = vsub.f32 %v970, %v974
    %v979 = vsub.f32 %v971, %v977
    %v980 = vmul.f32 %v978, 1.442695
    %v981 = vpow.pop %v980
    %v982 = vmul.f32 %v979, 1.442695
    %v983 = vpow.pop %v982
    %v984 = vsel %vm205, %v981, 0.0
    %985 = vadd.xlane.f32.xlu0 %v984
    %v986 = vpop.xlane.xlu0 %985
    %v987 = vsel %vm205, %v983, 0.0
    %988 = vadd.xlane.f32.xlu0 %v987
    %v989 = vpop.xlane.xlu0 %988
    %v990 = vrcp.pop %v986
    %v991 = vrcp.pop %v989
    %v992 = vmul.f32 %v981, %v990
    %v993 = vmul.f32 %v983, %v991
    %v994 = vpack.c.bf16 %v992, %v992
    %v995 = vpack.c.bf16 %v993, %v993
    %996 = vrot.lane.b32.xlu0 %v200, 40
    %v997 = vpop.permute.xlu0 %996
    %v999 = vsel %vm205, %v994, 0
    %v1002 = vsel %vm332, %v997, 0
    %1004 = vmatprep.subr.bf16.mxu0 0
    %1005 = vmatpush1.bf16.msra.mxu0 0
    %1006 = vmatprep.subr.bf16.mxu0 0
    %1007 = vmatpush1.bf16.msra.mxu0 0
    %1008 = vmatprep.subr.bf16.mxu0 0
    %1009 = vmatpush1.bf16.msra.mxu0 0
    %1010 = vmatprep.subr.bf16.mxu0 0
    %1011 = vmatpush1.bf16.msra.mxu0 0
    %1012 = vmatprep.subr.bf16.mxu0 0
    %1013 = vmatpush1.bf16.msra.mxu0 0
    %1014 = vmatprep.subr.bf16.mxu0 0
    %1015 = vmatpush1.bf16.msra.mxu0 0
    %1016 = vmatprep.subr.bf16.mxu0 0
    %1017 = vmatpush1.bf16.msra.mxu0 0
    %1018 = vmatprep.subr.bf16.mxu0 0
    %1019 = vmatpush1.bf16.msra.mxu0 %v1002
    %1020 = vmatprep.subr.bf16.mxu0 0
    %1021 = vmatpush2.bf16.msra.mxu0 0
    %1022 = vmatprep.subr.bf16.mxu0 0
    %1023 = vmatpush2.bf16.msra.mxu0 0
    %1024 = vmatprep.subr.bf16.mxu0 0
    %1025 = vmatpush2.bf16.msra.mxu0 0
    %1026 = vmatprep.subr.bf16.mxu0 0
    %1027 = vmatpush2.bf16.msra.mxu0 0
    %1028 = vmatprep.subr.bf16.mxu0 0
    %1029 = vmatpush2.bf16.msra.mxu0 0
    %1030 = vmatprep.subr.bf16.mxu0 0
    %1031 = vmatpush2.bf16.msra.mxu0 0
    %1032 = vmatprep.subr.bf16.mxu0 0
    %1033 = vmatpush2.bf16.msra.mxu0 0
    %1034 = vmatprep.subr.bf16.mxu0 0
    %1035 = vmatpush2.bf16.msra.mxu0 0
    %1036 = vmatprep.mubr.bf16.mxu0 0
    %1037 = vmatmul.mubr.bf16.gmra.mxu0 %v999
    %v1038 = vpop.f32.mrf.mxu0
    %v1039 = vadd.f32 0.0, %v1038
    %v1040 = vpop.f32.mrf.mxu0
    %v1041 = vpop.f32.mrf.mxu0
    %v1042 = vpop.f32.mrf.mxu0
    %1043 = vdwg.mxu0
    %1044 = vrot.lane.b32.xlu0 %v201, 40
    %v1045 = vpop.permute.xlu0 %1044
    %v1047 = vsel %vm205, %v995, 0
    %v1050 = vsel %vm332, %v1045, 0
    %1052 = vmatprep.subr.bf16.mxu0 0
    %1053 = vmatpush1.bf16.msra.mxu0 0
    %1054 = vmatprep.subr.bf16.mxu0 0
    %1055 = vmatpush1.bf16.msra.mxu0 0
    %1056 = vmatprep.subr.bf16.mxu0 0
    %1057 = vmatpush1.bf16.msra.mxu0 0
    %1058 = vmatprep.subr.bf16.mxu0 0
    %1059 = vmatpush1.bf16.msra.mxu0 0
    %1060 = vmatprep.subr.bf16.mxu0 0
    %1061 = vmatpush1.bf16.msra.mxu0 0
    %1062 = vmatprep.subr.bf16.mxu0 0
    %1063 = vmatpush1.bf16.msra.mxu0 0
    %1064 = vmatprep.subr.bf16.mxu0 0
    %1065 = vmatpush1.bf16.msra.mxu0 0
    %1066 = vmatprep.subr.bf16.mxu0 0
    %1067 = vmatpush1.bf16.msra.mxu0 %v1050
    %1068 = vmatprep.subr.bf16.mxu0 0
    %1069 = vmatpush2.bf16.msra.mxu0 0
    %1070 = vmatprep.subr.bf16.mxu0 0
    %1071 = vmatpush2.bf16.msra.mxu0 0
    %1072 = vmatprep.subr.bf16.mxu0 0
    %1073 = vmatpush2.bf16.msra.mxu0 0
    %1074 = vmatprep.subr.bf16.mxu0 0
    %1075 = vmatpush2.bf16.msra.mxu0 0
    %1076 = vmatprep.subr.bf16.mxu0 0
    %1077 = vmatpush2.bf16.msra.mxu0 0
    %1078 = vmatprep.subr.bf16.mxu0 0
    %1079 = vmatpush2.bf16.msra.mxu0 0
    %1080 = vmatprep.subr.bf16.mxu0 0
    %1081 = vmatpush2.bf16.msra.mxu0 0
    %1082 = vmatprep.subr.bf16.mxu0 0
    %1083 = vmatpush2.bf16.msra.mxu0 0
    %1084 = vmatprep.mubr.bf16.mxu0 0
    %1085 = vmatmul.mubr.bf16.gmra.mxu0 %v1047
    %v1086 = vpop.f32.mrf.mxu0
    %v1087 = vadd.f32 0.0, %v1086
    %v1088 = vpop.f32.mrf.mxu0
    %v1089 = vpop.f32.mrf.mxu0
    %v1090 = vpop.f32.mrf.mxu0
    %1091 = vdwg.mxu0
    %1094 = vrot.lane.b32.xlu0 %v595, 8
    %v1095 = vpop.permute.xlu0 %1094
    %1096 = vrot.lane.b32.xlu0 %v643, 8
    %v1097 = vpop.permute.xlu0 %1096
    %1102 = vrot.lane.b32.xlu0 %v817, 16
    %v1103 = vpop.permute.xlu0 %1102
    %1104 = vrot.lane.b32.xlu0 %v865, 16
    %v1105 = vpop.permute.xlu0 %1104
    %1110 = vrot.lane.b32.xlu0 %v1039, 24
    %v1111 = vpop.permute.xlu0 %1110
    %1112 = vrot.lane.b32.xlu0 %v1087, 24
    %v1113 = vpop.permute.xlu0 %1112
    %v1116 = vsel %vm205, %v371, %v1095
    %v1117 = vsel %vm205, %v419, %v1097
    %vm1118 = vcmask 130048
    %v1119 = vsel %vm1118, %v1116, %v1103
    %v1120 = vsel %vm1118, %v1117, %v1105
    %vm1121 = vcmask 195584
    %v1122 = vsel %vm1121, %v1119, %v1111
    %v1123 = vsel %vm1121, %v1120, %v1113
    %v1124 = vpack.c.bf16 %v1123, %v1122
    %v1125 = vld [vmem:[%s3] sm:$0xf]
    %v1126 = vld [vmem:[%s3 + $0x4] sm:$0xf]
    %v1127 = vld [vmem:[%s3 + $0x8] sm:$0xf]
    %v1128 = vld [vmem:[%s3 + $0xc] sm:$0xf]
    %v1133 = vunpack.c.l.b16 %v1125
    %v1134 = vunpack.c.l.b16 %v1126
    %v1135 = vunpack.c.l.b16 %v1127
    %v1136 = vunpack.c.l.b16 %v1128
    %v1137 = vpack.c.b16 %v1134, %v1133
    %v1138 = vpack.c.b16 %v1136, %v1135
    %v1142 = vsel %vm151, %v1124, 0
    %1144 = vmatprep.subr.bf16.mxu0 0
    %1145 = vmatpush1.bf16.msra.mxu0 0
    %1146 = vmatprep.subr.bf16.mxu0 0
    %1147 = vmatpush1.bf16.msra.mxu0 0
    %1148 = vmatprep.subr.bf16.mxu0 0
    %1149 = vmatpush1.bf16.msra.mxu0 0
    %1150 = vmatprep.subr.bf16.mxu0 0
    %1151 = vmatpush1.bf16.msra.mxu0 0
    %1152 = vmatprep.subr.bf16.mxu0 0
    %1153 = vmatpush1.bf16.msra.mxu0 0
    %1154 = vmatprep.subr.bf16.mxu0 0
    %1155 = vmatpush1.bf16.msra.mxu0 0
    %1156 = vmatprep.subr.bf16.mxu0 0
    %1157 = vmatpush1.bf16.msra.mxu0 %v1138
    %1158 = vmatprep.subr.bf16.mxu0 0
    %1159 = vmatpush1.bf16.msra.mxu0 %v1137
    %1160 = vmatprep.subr.bf16.mxu0 0
    %1161 = vmatpush2.bf16.msra.mxu0 0
    %1162 = vmatprep.subr.bf16.mxu0 0
    %1163 = vmatpush2.bf16.msra.mxu0 0
    %1164 = vmatprep.subr.bf16.mxu0 0
    %1165 = vmatpush2.bf16.msra.mxu0 0
    %1166 = vmatprep.subr.bf16.mxu0 0
    %1167 = vmatpush2.bf16.msra.mxu0 0
    %1168 = vmatprep.subr.bf16.mxu0 0
    %1169 = vmatpush2.bf16.msra.mxu0 0
    %1170 = vmatprep.subr.bf16.mxu0 0
    %1171 = vmatpush2.bf16.msra.mxu0 0
    %1172 = vmatprep.subr.bf16.mxu0 0
    %1173 = vmatpush2.bf16.msra.mxu0 0
    %1174 = vmatprep.subr.bf16.mxu0 0
    %1175 = vmatpush2.bf16.msra.mxu0 0
    %1176 = vmatprep.mubr.bf16.mxu0 0
    %1177 = vmatmul.mubr.bf16.gmra.mxu0 %v1142
    %v1178 = vpop.f32.mrf.mxu0
    %v1179 = vadd.f32 %v124, %v1178
    %v1180 = vpop.f32.mrf.mxu0
    %v1181 = vpop.f32.mrf.mxu0
    %v1182 = vadd.f32 %v125, %v1181
    %v1183 = vpop.f32.mrf.mxu0
    %1184 = vdwg.mxu0
    %v1185 = vld [vmem:[#allocation6] sm:$0x1]
    %v1186 = vld [vmem:[#allocation7] sm:$0x1]
    %v1187 = vsel %vm151, %v1179, 0.0
    %1188 = vadd.xlane.f32.xlu0 %v1187
    %v1189 = vpop.xlane.xlu0 %1188
    %v1190 = vsel %vm151, %v1182, 0.0
    %1191 = vadd.xlane.f32.xlu0 %v1190
    %v1192 = vpop.xlane.xlu0 %1191
    %v1193 = vrcp.pop 32.0
    %v1194 = vmul.f32 %v1189, %v1193
    %v1195 = vmul.f32 %v1192, %v1193
    %v1196 = vsub.f32 %v1179, %v1194
    %v1197 = vsub.f32 %v1182, %v1195
    %v1198 = vmul.f32 %v1196, %v1196
    %v1199 = vmul.f32 %v1197, %v1197
    %v1200 = vsel %vm151, %v1198, 0.0
    %1201 = vadd.xlane.f32.xlu0 %v1200
    %v1202 = vpop.xlane.xlu0 %1201
    %v1203 = vsel %vm151, %v1199, 0.0
    %1204 = vadd.xlane.f32.xlu0 %v1203
    %v1205 = vpop.xlane.xlu0 %1204
    %v1206 = vmul.f32 %v1202, %v1193
    %v1207 = vmul.f32 %v1205, %v1193
    %v1208 = vadd.f32 %v1206, 1e-12
    %v1209 = vadd.f32 %v1207, 1e-12
    %v1210 = vrsqrt.pop %v1208
    %v1211 = vrsqrt.pop %v1209
    %v1212 = vmul.f32 %v1196, %v1210
    %v1213 = vmul.f32 %v1197, %v1211
    %v1215 = vlaneseq
    %v1216 = vshrl.u32 %v1215, 7
    %v1217 = vsub.s32 0, %v1216
    %v1218 = vrot.slane %v1185, %v1217
    %v1220 = vmul.f32 %v1218, %v1212
    %v1221 = vmul.f32 %v1218, %v1213
    %v1223 = vlaneseq
    %v1224 = vshrl.u32 %v1223, 7
    %v1225 = vsub.s32 0, %v1224
    %v1226 = vrot.slane %v1186, %v1225
    %v1228 = vadd.f32 %v1220, %v1226
    %v1229 = vadd.f32 %v1221, %v1226
    %v1230 = vpack.c.bf16 %v1229, %v1228
    %v1231 = vld [vmem:[%s6] sm:$0xf]
    %v1232 = vld [vmem:[%s6 + $0x4] sm:$0xf]
    %v1233 = vld [vmem:[%s6 + $0x8] sm:$0xf]
    %v1234 = vld [vmem:[%s6 + $0xc] sm:$0xf]
    %v1235 = vld [vmem:[#allocation9] sm:$0x1]
    %v1237 = vlaneseq
    %v1238 = vshrl.u32 %v1237, 7
    %v1239 = vsub.s32 0, %v1238
    %v1240 = vrot.slane %v1235, %v1239
    %v1246 = vunpack.c.l.b16 %v1231
    %v1247 = vunpack.c.l.b16 %v1232
    %v1248 = vunpack.c.l.b16 %v1233
    %v1249 = vunpack.c.l.b16 %v1234
    %v1250 = vpack.c.b16 %v1247, %v1246
    %v1251 = vpack.c.b16 %v1249, %v1248
    %v1255 = vsel %vm151, %v1230, 0
    %1257 = vmatprep.subr.bf16.mxu0 0
    %1258 = vmatpush1.bf16.msra.mxu0 0
    %1259 = vmatprep.subr.bf16.mxu0 0
    %1260 = vmatpush1.bf16.msra.mxu0 0
    %1261 = vmatprep.subr.bf16.mxu0 0
    %1262 = vmatpush1.bf16.msra.mxu0 0
    %1263 = vmatprep.subr.bf16.mxu0 0
    %1264 = vmatpush1.bf16.msra.mxu0 0
    %1265 = vmatprep.subr.bf16.mxu0 0
    %1266 = vmatpush1.bf16.msra.mxu0 0
    %1267 = vmatprep.subr.bf16.mxu0 0
    %1268 = vmatpush1.bf16.msra.mxu0 0
    %1269 = vmatprep.subr.bf16.mxu0 0
    %1270 = vmatpush1.bf16.msra.mxu0 %v1251
    %1271 = vmatprep.subr.bf16.mxu0 0
    %1272 = vmatpush1.bf16.msra.mxu0 %v1250
    %1273 = vmatprep.subr.bf16.mxu0 0
    %1274 = vmatpush2.bf16.msra.mxu0 0
    %1275 = vmatprep.subr.bf16.mxu0 0
    %1276 = vmatpush2.bf16.msra.mxu0 0
    %1277 = vmatprep.subr.bf16.mxu0 0
    %1278 = vmatpush2.bf16.msra.mxu0 0
    %1279 = vmatprep.subr.bf16.mxu0 0
    %1280 = vmatpush2.bf16.msra.mxu0 0
    %1281 = vmatprep.subr.bf16.mxu0 0
    %1282 = vmatpush2.bf16.msra.mxu0 0
    %1283 = vmatprep.subr.bf16.mxu0 0
    %1284 = vmatpush2.bf16.msra.mxu0 0
    %1285 = vmatprep.subr.bf16.mxu0 0
    %1286 = vmatpush2.bf16.msra.mxu0 0
    %1287 = vmatprep.subr.bf16.mxu0 0
    %1288 = vmatpush2.bf16.msra.mxu0 0
    %1289 = vmatprep.mubr.bf16.mxu0 0
    %1290 = vmatmul.mubr.bf16.gmra.mxu0 %v1255
    %v1291 = vpop.f32.mrf.mxu0
    %v1292 = vadd.f32 %v1240, %v1291
    %v1293 = vpop.f32.mrf.mxu0
    %v1294 = vpop.f32.mrf.mxu0
    %v1295 = vadd.f32 %v1240, %v1294
    %v1296 = vpop.f32.mrf.mxu0
    %1297 = vdwg.mxu0
    %v1298 = vmax.f32 %v1292, 0.0
    %v1299 = vmax.f32 %v1295, 0.0
    %v1300 = vpack.c.bf16 %v1299, %v1298
    %v1301 = vld [vmem:[%s8] sm:$0xf]
    %v1302 = vld [vmem:[%s8 + $0x4] sm:$0xf]
    %v1303 = vld [vmem:[%s8 + $0x8] sm:$0xf]
    %v1304 = vld [vmem:[%s8 + $0xc] sm:$0xf]
    %v1305 = vld [vmem:[%s8 + $0x10] sm:$0xf]
    %v1306 = vld [vmem:[%s8 + $0x14] sm:$0xf]
    %v1307 = vld [vmem:[%s8 + $0x18] sm:$0xf]
    %v1308 = vld [vmem:[%s8 + $0x1c] sm:$0xf]
    %v1309 = vld [vmem:[#allocation10] sm:$0x1]
    %v1311 = vlaneseq
    %v1312 = vshrl.u32 %v1311, 7
    %v1313 = vsub.s32 0, %v1312
    %v1314 = vrot.slane %v1309, %v1313
    %v1324 = vunpack.c.l.b16 %v1301
    %v1325 = vunpack.c.l.b16 %v1302
    %v1326 = vunpack.c.l.b16 %v1303
    %v1327 = vunpack.c.l.b16 %v1304
    %v1328 = vunpack.c.l.b16 %v1305
    %v1329 = vunpack.c.l.b16 %v1306
    %v1330 = vunpack.c.l.b16 %v1307
    %v1331 = vunpack.c.l.b16 %v1308
    %v1332 = vpack.c.b16 %v1325, %v1324
    %v1333 = vpack.c.b16 %v1327, %v1326
    %v1334 = vpack.c.b16 %v1329, %v1328
    %v1335 = vpack.c.b16 %v1331, %v1330
    %vm1340 = vcmask 523264
    %v1342 = vsel %vm1340, %v1300, 0
    %1344 = vmatprep.subr.bf16.mxu0 0
    %1345 = vmatpush1.bf16.msra.mxu0 0
    %1346 = vmatprep.subr.bf16.mxu0 0
    %1347 = vmatpush1.bf16.msra.mxu0 0
    %1348 = vmatprep.subr.bf16.mxu0 0
    %1349 = vmatpush1.bf16.msra.mxu0 0
    %1350 = vmatprep.subr.bf16.mxu0 0
    %1351 = vmatpush1.bf16.msra.mxu0 0
    %1352 = vmatprep.subr.bf16.mxu0 0
    %1353 = vmatpush1.bf16.msra.mxu0 %v1335
    %1354 = vmatprep.subr.bf16.mxu0 0
    %1355 = vmatpush1.bf16.msra.mxu0 %v1334
    %1356 = vmatprep.subr.bf16.mxu0 0
    %1357 = vmatpush1.bf16.msra.mxu0 %v1333
    %1358 = vmatprep.subr.bf16.mxu0 0
    %1359 = vmatpush1.bf16.msra.mxu0 %v1332
    %1360 = vmatprep.subr.bf16.mxu0 0
    %1361 = vmatpush2.bf16.msra.mxu0 0
    %1362 = vmatprep.subr.bf16.mxu0 0
    %1363 = vmatpush2.bf16.msra.mxu0 0
    %1364 = vmatprep.subr.bf16.mxu0 0
    %1365 = vmatpush2.bf16.msra.mxu0 0
    %1366 = vmatprep.subr.bf16.mxu0 0
    %1367 = vmatpush2.bf16.msra.mxu0 0
    %1368 = vmatprep.subr.bf16.mxu0 0
    %1369 = vmatpush2.bf16.msra.mxu0 0
    %1370 = vmatprep.subr.bf16.mxu0 0
    %1371 = vmatpush2.bf16.msra.mxu0 0
    %1372 = vmatprep.subr.bf16.mxu0 0
    %1373 = vmatpush2.bf16.msra.mxu0 0
    %1374 = vmatprep.subr.bf16.mxu0 0
    %1375 = vmatpush2.bf16.msra.mxu0 0
    %1376 = vmatprep.mubr.bf16.mxu0 0
    %1377 = vmatmul.mubr.bf16.gmra.mxu0 %v1342
    %v1378 = vpop.f32.mrf.mxu0
    %v1379 = vadd.f32 %v1314, %v1378
    %v1380 = vpop.f32.mrf.mxu0
    %v1381 = vpop.f32.mrf.mxu0
    %v1382 = vadd.f32 %v1314, %v1381
    %v1383 = vpop.f32.mrf.mxu0
    %1384 = vdwg.mxu0
    %v1385 = vadd.f32 %v1379, %v1228
    %v1386 = vadd.f32 %v1382, %v1229
    %v1387 = vld [vmem:[#allocation12] sm:$0x1]
    %v1388 = vld [vmem:[#allocation13] sm:$0x1]
    %v1389 = vsel %vm151, %v1385, 0.0
    %1390 = vadd.xlane.f32.xlu0 %v1389
    %v1391 = vpop.xlane.xlu0 %1390
    %v1392 = vsel %vm151, %v1386, 0.0
    %1393 = vadd.xlane.f32.xlu0 %v1392
    %v1394 = vpop.xlane.xlu0 %1393
    %v1395 = vmul.f32 %v1391, %v1193
    %v1396 = vmul.f32 %v1394, %v1193
    %v1397 = vsub.f32 %v1385, %v1395
    %v1398 = vsub.f32 %v1386, %v1396
    %v1399 = vmul.f32 %v1397, %v1397
    %v1400 = vmul.f32 %v1398, %v1398
    %v1401 = vsel %vm151, %v1399, 0.0
    %1402 = vadd.xlane.f32.xlu0 %v1401
    %v1403 = vpop.xlane.xlu0 %1402
    %v1404 = vsel %vm151, %v1400, 0.0
    %1405 = vadd.xlane.f32.xlu0 %v1404
    %v1406 = vpop.xlane.xlu0 %1405
    %v1407 = vmul.f32 %v1403, %v1193
    %v1408 = vmul.f32 %v1406, %v1193
    %v1409 = vadd.f32 %v1407, 1e-12
    %v1410 = vadd.f32 %v1408, 1e-12
    %v1411 = vrsqrt.pop %v1409
    %v1412 = vrsqrt.pop %v1410
    %v1413 = vmul.f32 %v1397, %v1411
    %v1414 = vmul.f32 %v1398, %v1412
    %v1416 = vlaneseq
    %v1417 = vshrl.u32 %v1416, 7
    %v1418 = vsub.s32 0, %v1417
    %v1419 = vrot.slane %v1387, %v1418
    %v1421 = vmul.f32 %v1419, %v1413
    %v1422 = vmul.f32 %v1419, %v1414
    %v1424 = vlaneseq
    %v1425 = vshrl.u32 %v1424, 7
    %v1426 = vsub.s32 0, %v1425
    %v1427 = vrot.slane %v1388, %v1426
    %v1429 = vadd.f32 %v1421, %v1427
    %v1430 = vadd.f32 %v1422, %v1427
    %1431 = vst.msk [vmem:[#allocation15] sm:$0xff] %vm151, %v1429
    %1432 = vst.msk [vmem:[#allocation15 + $0x8] sm:$0xff] %vm151, %v1430
    // Predicated region
    $region78: #{transformer_encoder_block.1} parent=1 // pred_check
      _
    $region79: #{transformer_encoder_block.1} parent=1 // pred_check_branch
      %1434 = sbr.rel (0) target = $region81
    $region80: #{transformer_encoder_block.1} parent=1 // pred_region
      %s1436 = ssub.s32 256, 256
      %1437 = vsyncadd [#allocation4], %s1436
      %s1438 = sshll.u32 [#allocation15], 4
      %s1439 = int_to_ptr.vmem [resolvable:$true] %s1438
      %1444 = dma.vmem_to_hbm [thread:$0]  %s1439, 256, %s12, [#allocation4], 128, 128, 8
    $region81: #{transformer_encoder_block.1} parent=1 // pred_fallthru
      _
    // Predicated region
    $region82: #{transformer_encoder_block.1} parent=1 // pred_check
      _
    $region83: #{transformer_encoder_block.1} parent=1 // pred_check_branch
      %1446 = sbr.rel (0) target = $region85
    $region84: #{transformer_encoder_block.1} parent=1 // pred_region
      %1447 = dma.done [#allocation4], 256
    $region85: #{transformer_encoder_block.1} parent=1 // pred_fallthru
      _
    %1448 = vsyncpa [#allocation3], 1
    %1449 = vsyncpa [#allocation8], 1
    %1450 = vsyncpa [#allocation11], 1
    %1451 = vsyncpa [#allocation14], 1
    %1452 = vsyncpa [#allocation4], 1
    %1453 = vsyncpa [#allocation5], 1

</llo_original>
